<compile_context>
chip_gen: v6e
topology: v6e:2x2x1
jax: 0.10.0
libtpu: 0.0.40
codegen_flags: <defaults>
</compile_context>

<pallas_src>
import math
from functools import partial

import jax
import jax.numpy as jnp
from jax.experimental import pallas as pl
from jax.experimental.pallas import tpu as pltpu


def _round_up(x, m):
    return ((x + m - 1) // m) * m


def _mha_proj_kernel(q_ref, k_ref, v_ref, wl_ref, bl_ref, wo_ref, bo_ref,
                     o_ref, *, h, d_k):
    # Per grid step (TB batch elements):
    #   q_ref : (TB, d_model)            k_ref / v_ref : (TB, S, d_k)
    #   wl_ref: (d_model, d_model)       bl_ref: (1, d_model)     [PyTorch (out, in)]
    #   wo_ref: (d_out, d_model)         bo_ref: (1, d_out)       [PyTorch (out, in)]
    #   o_ref : (TB, d_out)
    q_in = q_ref[...]                    # (TB, d_model), compute dtype
    k = k_ref[...]                       # (TB, S, d_k)
    v = v_ref[...]                       # (TB, S, d_k)
    tb = q_in.shape[0]

    # self.linear(query): contract on the "in" axis of the (out, in) weight.
    q = jnp.einsum('bi,oi->bo', q_in, wl_ref[...],
                   preferred_element_type=jnp.float32) + bl_ref[...]   # (TB, d_model) f32

    # Fold the 1/sqrt(d_k) scale into q once.
    q = q * (1.0 / math.sqrt(d_k))
    qh = q.reshape(tb, h, d_k)                                         # (TB, h, d_k) f32

    # scores[b, hd, s] = sum_d qh[b, hd, d] * k[b, s, d]   (no explicit k.T)
    s = jnp.einsum('bhd,bsd->bhs', qh.astype(k.dtype), k,
                   preferred_element_type=jnp.float32)                 # (TB, h, S) f32

    # Stable softmax over S, kept in f32.
    s = s - jnp.max(s, axis=-1, keepdims=True)
    e = jnp.exp(s)
    p = e * pl.reciprocal(jnp.sum(e, axis=-1, keepdims=True), approx=True)

    # ctx[b, hd, d] = sum_s p[b, hd, s] * v[b, s, d]
    ctx = jnp.einsum('bhs,bsd->bhd', p.astype(v.dtype), v,
                     preferred_element_type=jnp.float32)               # (TB, h, d_k) f32
    x = ctx.reshape(tb, h * d_k)                                       # (TB, d_model) f32

    # self.linear_out(x): contract on the "in" axis of the (out, in) weight.
    out = jnp.einsum('bi,oi->bo', x.astype(wo_ref.dtype), wo_ref[...],
                     preferred_element_type=jnp.float32) + bo_ref[...] # (TB, d_out) f32
    o_ref[...] = out.astype(o_ref.dtype)


def mha_projection(query, key, value, w_lin, b_lin, w_out, b_out, *, h,
                   tb=None, compute_dtype=jnp.float32, out_dtype=jnp.float32):
    """Forward of MultiHeadedAttentionProjection (proj_type=2, mask=None, eval).

    query: (B, d_model); key/value: (B, S, d_k); weights in PyTorch (out, in)
    convention. Returns (B, d_model * h).
    """
    B, d_model = query.shape
    _, S, d_k = key.shape
    assert d_model == h * d_k
    d_out = w_out.shape[0]               # d_model * h

    # Batch-tile size: fill the MXU M dimension; minimum 16 rows for sublane
    # density (also safe for bf16 packing).  Pad B up to a multiple of tb.
    if tb is None:
        tb = min(256, _round_up(B, 16))
    tb = max(16, _round_up(tb, 16))
    B_pad = _round_up(B, tb)
    if B_pad != B:
        pad = B_pad - B
        query = jnp.pad(query, ((0, pad), (0, 0)))
        key = jnp.pad(key, ((0, pad), (0, 0), (0, 0)))
        value = jnp.pad(value, ((0, pad), (0, 0), (0, 0)))

    # MXU operands in compute_dtype (bf16 on v6e/v7x for 2x DMA/VMEM + MXU rate);
    # biases and softmax stay f32.
    q_c = query.astype(compute_dtype)
    k_c = key.astype(compute_dtype)
    v_c = value.astype(compute_dtype)
    wl_c = w_lin.astype(compute_dtype)   # (d_model, d_model), PyTorch (out, in)
    wo_c = w_out.astype(compute_dtype)   # (d_out, d_model),   PyTorch (out, in)
    bl2 = b_lin.reshape(1, -1).astype(jnp.float32)
    bo2 = b_out.reshape(1, -1).astype(jnp.float32)

    kernel = partial(_mha_proj_kernel, h=h, d_k=d_k)
    out = pl.pallas_call(
        kernel,
        out_shape=jax.ShapeDtypeStruct((B_pad, d_out), out_dtype),
        grid=(B_pad // tb,),
        in_specs=[
            pl.BlockSpec((tb, d_model), lambda b: (b, 0)),        # query
            pl.BlockSpec((tb, S, d_k), lambda b: (b, 0, 0)),      # key
            pl.BlockSpec((tb, S, d_k), lambda b: (b, 0, 0)),      # value
            pl.BlockSpec((d_model, d_model), lambda b: (0, 0)),   # W_lin (out, in)
            pl.BlockSpec((1, d_model), lambda b: (0, 0)),         # b_lin
            pl.BlockSpec((d_out, d_model), lambda b: (0, 0)),     # W_out (out, in)
            pl.BlockSpec((1, d_out), lambda b: (0, 0)),           # b_out
        ],
        out_specs=pl.BlockSpec((tb, d_out), lambda b: (b, 0)),
        compiler_params=pltpu.CompilerParams(
            dimension_semantics=("parallel",),        # batch axis is independent (2 TCs on v7x)
            vmem_limit_bytes=64 * 1024 * 1024),       # fits v7x's 64 MiB VMEM
    )(q_c, k_c, v_c, wl_c, bl2, wo_c, bo2)
    return out[:B]


def reference(query, key, value, w_lin, b_lin, w_out, b_out, *, h):
    """Pure-JAX transcription of the PyTorch forward (proj_type=2, mask=None, eval)."""
    B, d_model = query.shape
    _, S, d_k = key.shape
    q = query @ w_lin.T + b_lin                                   # (B, d_model)
    q = q.reshape(B, 1, h, d_k).transpose(0, 2, 1, 3)             # (B, h, 1, d_k)
    k = jnp.tile(key, (1, 1, h)).reshape(B, S, h, d_k).transpose(0, 2, 1, 3)
    v = jnp.tile(value, (1, 1, h)).reshape(B, S, h, d_k).transpose(0, 2, 1, 3)
    scores = jnp.einsum('bhqd,bhkd->bhqk', q, k) / math.sqrt(d_k)
    p = jax.nn.softmax(scores, axis=-1)
    x = jnp.einsum('bhqk,bhkd->bhqd', p, v)                       # (B, h, 1, d_k)
    x = x.transpose(0, 2, 1, 3).reshape(B, h * d_k)
    return x @ w_out.T + b_out


if __name__ == "__main__":
    B, S, h, d_model = 2, 8, 4, 32
    d_k = d_model // h

    root = jax.random.PRNGKey(0)
    ks = jax.random.split(root, 7)
    query = jax.random.normal(ks[0], (B, d_model), jnp.float32)
    key_in = jax.random.normal(ks[1], (B, S, d_k), jnp.float32)
    value_in = jax.random.normal(ks[2], (B, S, d_k), jnp.float32)

    # proj_type=2 parameters (PyTorch (out, in) convention), deterministic init.
    w_lin = 0.1 * jax.random.normal(ks[3], (d_model, d_model), jnp.float32)
    b_lin = 0.1 * jax.random.normal(ks[4], (d_model,), jnp.float32)
    w_out = 0.1 * jax.random.normal(ks[5], (d_model * h, d_model), jnp.float32)
    b_out = 0.1 * jax.random.normal(ks[6], (d_model * h,), jnp.float32)

    ref = reference(query, key_in, value_in, w_lin, b_lin, w_out, b_out, h=h)

    # f32 MXU operands: validates structure (tolerance covers approx reciprocal).
    out_f32 = mha_projection(query, key_in, value_in, w_lin, b_lin, w_out, b_out,
                             h=h, compute_dtype=jnp.float32)
    out_f32 = jax.block_until_ready(out_f32)
    assert out_f32.shape == (B, d_model * h), out_f32.shape
    assert jnp.allclose(out_f32, ref, atol=1e-2, rtol=1e-2), \
        float(jnp.max(jnp.abs(out_f32 - ref)))

    # bf16 MXU operands (v6e/v7x recommended path); softmax stays f32.
    out_bf16 = mha_projection(query, key_in, value_in, w_lin, b_lin, w_out, b_out,
                              h=h, compute_dtype=jnp.bfloat16)
    out_bf16 = jax.block_until_ready(out_bf16)
    assert jnp.allclose(out_bf16, ref, atol=8e-2, rtol=8e-2), \
        float(jnp.max(jnp.abs(out_bf16 - ref)))

    print("KERNEL_OK")
</pallas_src>

<mosaic_0001>
module attributes {stable_mosaic.version = 11 : i64} {
  func.func @_mha_proj_kernel(%arg0: i32, %arg1: memref<16x32xf32, #tpu.memory_space<vmem>>, %arg2: memref<16x8x8xf32, #tpu.memory_space<vmem>>, %arg3: memref<16x8x8xf32, #tpu.memory_space<vmem>>, %arg4: memref<32x32xf32, #tpu.memory_space<vmem>>, %arg5: memref<1x32xf32, #tpu.memory_space<vmem>>, %arg6: memref<128x32xf32, #tpu.memory_space<vmem>>, %arg7: memref<1x128xf32, #tpu.memory_space<vmem>>, %arg8: memref<16x128xf32, #tpu.memory_space<vmem>>) attributes {dimension_semantics = [#tpu.dimension_semantics<parallel>], iteration_bounds = array<i64: 1>, scalar_prefetch = 0 : i64, scratch_operands = 0 : i64, tpu.core_type = #tpu.core_type<tc>, window_params = [{transform_indices = @transform_0, window_bounds = array<i64: 16, 32>}, {transform_indices = @transform_1, window_bounds = array<i64: 16, 8, 8>}, {transform_indices = @transform_2, window_bounds = array<i64: 16, 8, 8>}, {pipeline_mode = #tpu.pipeline_mode<synchronous>, transform_indices = @transform_3, window_bounds = array<i64: 32, 32>}, {pipeline_mode = #tpu.pipeline_mode<synchronous>, transform_indices = @transform_4, window_bounds = array<i64: 1, 32>}, {pipeline_mode = #tpu.pipeline_mode<synchronous>, transform_indices = @transform_5, window_bounds = array<i64: 128, 32>}, {pipeline_mode = #tpu.pipeline_mode<synchronous>, transform_indices = @transform_6, window_bounds = array<i64: 1, 128>}, {transform_indices = @transform_7, window_bounds = array<i64: 16, 128>}]} {
    %c0 = arith.constant 0 : index
    %c0_0 = arith.constant 0 : index
    %0 = vector.load %arg1[%c0, %c0_0] : memref<16x32xf32, #tpu.memory_space<vmem>>, vector<16x32xf32>
    %c0_1 = arith.constant 0 : index
    %c0_2 = arith.constant 0 : index
    %c0_3 = arith.constant 0 : index
    %1 = vector.load %arg2[%c0_1, %c0_2, %c0_3] : memref<16x8x8xf32, #tpu.memory_space<vmem>>, vector<16x8x8xf32>
    %c0_4 = arith.constant 0 : index
    %c0_5 = arith.constant 0 : index
    %c0_6 = arith.constant 0 : index
    %2 = vector.load %arg3[%c0_4, %c0_5, %c0_6] : memref<16x8x8xf32, #tpu.memory_space<vmem>>, vector<16x8x8xf32>
    %c0_7 = arith.constant 0 : index
    %c0_8 = arith.constant 0 : index
    %3 = vector.load %arg4[%c0_7, %c0_8] : memref<32x32xf32, #tpu.memory_space<vmem>>, vector<32x32xf32>
    "tpu.trace_start"() <{level = 10 : i32, message = "bi,oi->bo"}> : () -> ()
    %cst = arith.constant dense<0.000000e+00> : vector<16x32xf32>
    %4 = tpu.matmul %0, %3, %cst {dimension_numbers = #tpu.dot_dimension_numbers<[1], [1], [0], [0], [0, 0, 1, 0], [], []>} : vector<16x32xf32>, vector<32x32xf32>, vector<16x32xf32> -> vector<16x32xf32>
    "tpu.trace_stop"() : () -> ()
    %c0_9 = arith.constant 0 : index
    %c0_10 = arith.constant 0 : index
    %5 = vector.load %arg5[%c0_9, %c0_10] : memref<1x32xf32, #tpu.memory_space<vmem>>, vector<1x32xf32>
    %6 = vector.broadcast %5 : vector<1x32xf32> to vector<16x32xf32>
    %7 = arith.addf %4, %6 : vector<16x32xf32>
    %cst_11 = arith.constant 0.353553385 : f32
    %8 = vector.broadcast %cst_11 : f32 to vector<16x32xf32>
    %9 = arith.mulf %7, %8 : vector<16x32xf32>
    %10 = vector.shape_cast %9 : vector<16x32xf32> to vector<16x4x8xf32>
    "tpu.trace_start"() <{level = 10 : i32, message = "bhd,bsd->bhs"}> : () -> ()
    %cst_12 = arith.constant dense<0.000000e+00> : vector<16x4x8xf32>
    %11 = tpu.matmul %10, %1, %cst_12 {dimension_numbers = #tpu.dot_dimension_numbers<[2], [2], [1], [1], [0, 0, 0, 1, 1, 1], [0], [0]>} : vector<16x4x8xf32>, vector<16x8x8xf32>, vector<16x4x8xf32> -> vector<16x4x8xf32>
    "tpu.trace_stop"() : () -> ()
    %cst_13 = arith.constant dense<0xFF800000> : vector<16x4xf32>
    %12 = vector.multi_reduction <maximumf>, %11, %cst_13 [2] : vector<16x4x8xf32> to vector<16x4xf32>
    %13 = vector.shape_cast %12 : vector<16x4xf32> to vector<16x4x1xf32>
    %14 = vector.broadcast %13 : vector<16x4x1xf32> to vector<16x4x8xf32>
    %15 = arith.subf %11, %14 : vector<16x4x8xf32>
    %16 = math.exp %15 : vector<16x4x8xf32>
    %cst_14 = arith.constant dense<0.000000e+00> : vector<16x4xf32>
    %17 = vector.multi_reduction <add>, %16, %cst_14 [2] : vector<16x4x8xf32> to vector<16x4xf32>
    %18 = vector.shape_cast %17 : vector<16x4xf32> to vector<16x4x1xf32>
    %19 = tpu.reciprocal %18 {approx = true} : vector<16x4x1xf32> -> vector<16x4x1xf32>
    %20 = vector.broadcast %19 : vector<16x4x1xf32> to vector<16x4x8xf32>
    %21 = arith.mulf %16, %20 : vector<16x4x8xf32>
    "tpu.trace_start"() <{level = 10 : i32, message = "bhs,bsd->bhd"}> : () -> ()
    %cst_15 = arith.constant dense<0.000000e+00> : vector<16x4x8xf32>
    %22 = tpu.matmul %21, %2, %cst_15 {dimension_numbers = #tpu.dot_dimension_numbers<[2], [1], [1], [2], [0, 0, 0, 1, 1, 2], [0], [0]>} : vector<16x4x8xf32>, vector<16x8x8xf32>, vector<16x4x8xf32> -> vector<16x4x8xf32>
    "tpu.trace_stop"() : () -> ()
    %23 = vector.shape_cast %22 : vector<16x4x8xf32> to vector<16x32xf32>
    %c0_16 = arith.constant 0 : index
    %c0_17 = arith.constant 0 : index
    %24 = vector.load %arg6[%c0_16, %c0_17] : memref<128x32xf32, #tpu.memory_space<vmem>>, vector<128x32xf32>
    "tpu.trace_start"() <{level = 10 : i32, message = "bi,oi->bo"}> : () -> ()
    %cst_18 = arith.constant dense<0.000000e+00> : vector<16x128xf32>
    %25 = tpu.matmul %23, %24, %cst_18 {dimension_numbers = #tpu.dot_dimension_numbers<[1], [1], [0], [0], [0, 0, 1, 0], [], []>} : vector<16x32xf32>, vector<128x32xf32>, vector<16x128xf32> -> vector<16x128xf32>
    "tpu.trace_stop"() : () -> ()
    %c0_19 = arith.constant 0 : index
    %c0_20 = arith.constant 0 : index
    %26 = vector.load %arg7[%c0_19, %c0_20] : memref<1x128xf32, #tpu.memory_space<vmem>>, vector<1x128xf32>
    %27 = vector.broadcast %26 : vector<1x128xf32> to vector<16x128xf32>
    %28 = arith.addf %25, %27 : vector<16x128xf32>
    %c0_21 = arith.constant 0 : index
    %c0_22 = arith.constant 0 : index
    %29 = vector.load %arg8[%c0_21, %c0_22] : memref<16x128xf32, #tpu.memory_space<vmem>>, vector<16x128xf32>
    tpu.vector_store %arg8[%c0_21, %c0_22], %28 {strides = array<i32>} : memref<16x128xf32, #tpu.memory_space<vmem>>, vector<16x128xf32>,
    return
  }
  func.func @transform_0(%arg0: i32) -> (i32, i32) {
    %c0_i32 = arith.constant 0 : i32
    %c0_i32_0 = arith.constant 0 : i32
    return %arg0, %c0_i32 : i32, i32
  }
  func.func @transform_1(%arg0: i32) -> (i32, i32, i32) {
    %c0_i32 = arith.constant 0 : i32
    %c0_i32_0 = arith.constant 0 : i32
    %c0_i32_1 = arith.constant 0 : i32
    return %arg0, %c0_i32, %c0_i32_0 : i32, i32, i32
  }
  func.func @transform_2(%arg0: i32) -> (i32, i32, i32) {
    %c0_i32 = arith.constant 0 : i32
    %c0_i32_0 = arith.constant 0 : i32
    %c0_i32_1 = arith.constant 0 : i32
    return %arg0, %c0_i32, %c0_i32_0 : i32, i32, i32
  }
  func.func @transform_3(%arg0: i32) -> (i32, i32) {
    %c0_i32 = arith.constant 0 : i32
    %c0_i32_0 = arith.constant 0 : i32
    %c0_i32_1 = arith.constant 0 : i32
    return %c0_i32, %c0_i32_0 : i32, i32
  }
  func.func @transform_4(%arg0: i32) -> (i32, i32) {
    %c0_i32 = arith.constant 0 : i32
    %c0_i32_0 = arith.constant 0 : i32
    %c0_i32_1 = arith.constant 0 : i32
    return %c0_i32, %c0_i32_0 : i32, i32
  }
  func.func @transform_5(%arg0: i32) -> (i32, i32) {
    %c0_i32 = arith.constant 0 : i32
    %c0_i32_0 = arith.constant 0 : i32
    %c0_i32_1 = arith.constant 0 : i32
    return %c0_i32, %c0_i32_0 : i32, i32
  }
  func.func @transform_6(%arg0: i32) -> (i32, i32) {
    %c0_i32 = arith.constant 0 : i32
    %c0_i32_0 = arith.constant 0 : i32
    %c0_i32_1 = arith.constant 0 : i32
    return %c0_i32, %c0_i32_0 : i32, i32
  }
  func.func @transform_7(%arg0: i32) -> (i32, i32) {
    %c0_i32 = arith.constant 0 : i32
    %c0_i32_0 = arith.constant 0 : i32
    return %arg0, %c0_i32 : i32, i32
  }
}

</mosaic_0001>

<llo_original>
// kernel: tpu_custom_call.1
$region0: #{tpu_custom_call.1}
  #allocation0 [shape = 'u32[]', space=smem, size = 0x4, offset = 0x4, fixed_abs, tag = 'smem constant byte address 0x4 - core index']
  #allocation1 [shape = 'u32[144,128]{1,0:T(1,128)}', space=vmem, size = 0x12000, scoped, tag = 'internal scratch']
  %s0 = inlined_call_operand.vmem [shape: f32[16,32], index: 0, kind: input, shape index: {}]
  %s1 = inlined_call_operand.vmem [shape: f32[16,8,8], index: 1, kind: input, shape index: {}]
  %s2 = inlined_call_operand.vmem [shape: f32[16,8,8], index: 2, kind: input, shape index: {}]
  %s3 = inlined_call_operand.vmem [shape: f32[32,32], index: 3, kind: input, shape index: {}]
  %s4 = inlined_call_operand.vmem [shape: f32[1,32], index: 4, kind: input, shape index: {}]
  %s5 = inlined_call_operand.vmem [shape: f32[128,32], index: 5, kind: input, shape index: {}]
  %s6 = inlined_call_operand.vmem [shape: f32[1,128], index: 6, kind: input, shape index: {}]
  %s7 = inlined_call_operand.hbm [shape: f32[16,128], index: 7, kind: output, shape index: {}]
  %s8 = sld [smem:[#allocation0]]
  $region38: #{tpu_custom_call.1} parent=0
    _
  %s10 = ssub.s32 1, %s8
  %s11 = scalar_select 0, %s10, %s8
  $region1: #{tpu_custom_call.1} parent=0
    #allocation2 [shape = 'u8[8192]{0}', space=vmem, size = 0x2000, scoped, tag = 'output window, operand 0, single buffered']
    #allocation3 [shape = 's32[1]{0}', space=sflag, size = 0x4, scoped, tag = 'scoped memory for tpu_custom_call.1']
    %12 = vsyncpa [#allocation3], 0
    // Predicated region
    $region2: #{tpu_custom_call.1} parent=1 // pred_check
      _
    $region3: #{tpu_custom_call.1} parent=1 // pred_check_branch
      %14 = sbr.rel (0) target = $region5
    $region4: #{tpu_custom_call.1} parent=1 // pred_region
      _
    $region5: #{tpu_custom_call.1} parent=1 // pred_fallthru
      _
    // Predicated region
    $region6: #{tpu_custom_call.1} parent=1 // pred_check
      _
    $region7: #{tpu_custom_call.1} parent=1 // pred_check_branch
      %16 = sbr.rel (0) target = $region9
    $region8: #{tpu_custom_call.1} parent=1 // pred_region
      _
    $region9: #{tpu_custom_call.1} parent=1 // pred_fallthru
      _
    // Predicated region
    $region10: #{tpu_custom_call.1} parent=1 // pred_check
      _
    $region11: #{tpu_custom_call.1} parent=1 // pred_check_branch
      %18 = sbr.rel (0) target = $region13
    $region12: #{tpu_custom_call.1} parent=1 // pred_region
      _
    $region13: #{tpu_custom_call.1} parent=1 // pred_fallthru
      _
    // Predicated region
    $region14: #{tpu_custom_call.1} parent=1 // pred_check
      _
    $region15: #{tpu_custom_call.1} parent=1 // pred_check_branch
      %20 = sbr.rel (0) target = $region17
    $region16: #{tpu_custom_call.1} parent=1 // pred_region
      _
    $region17: #{tpu_custom_call.1} parent=1 // pred_fallthru
      _
    // Predicated region
    $region18: #{tpu_custom_call.1} parent=1 // pred_check
      _
    $region19: #{tpu_custom_call.1} parent=1 // pred_check_branch
      %22 = sbr.rel (0) target = $region21
    $region20: #{tpu_custom_call.1} parent=1 // pred_region
      _
    $region21: #{tpu_custom_call.1} parent=1 // pred_fallthru
      _
    // Predicated region
    $region22: #{tpu_custom_call.1} parent=1 // pred_check
      _
    $region23: #{tpu_custom_call.1} parent=1 // pred_check_branch
      %24 = sbr.rel (0) target = $region25
    $region24: #{tpu_custom_call.1} parent=1 // pred_region
      _
    $region25: #{tpu_custom_call.1} parent=1 // pred_fallthru
      _
    // Predicated region
    $region26: #{tpu_custom_call.1} parent=1 // pred_check
      _
    $region27: #{tpu_custom_call.1} parent=1 // pred_check_branch
      %26 = sbr.rel (0) target = $region29
    $region28: #{tpu_custom_call.1} parent=1 // pred_region
      _
    $region29: #{tpu_custom_call.1} parent=1 // pred_fallthru
      _
    %v27 = vld [vmem:[%s0] sm:$0xff]
    %v28 = vld [vmem:[%s0 + $0x8] sm:$0xff]
    %v29 = vld [vmem:[%s1] sm:$0xff]
    %v30 = vld [vmem:[%s1 + $0x8] sm:$0xff]
    %v31 = vld [vmem:[%s1 + $0x10] sm:$0xff]
    %v32 = vld [vmem:[%s1 + $0x18] sm:$0xff]
    %v33 = vld [vmem:[%s1 + $0x20] sm:$0xff]
    %v34 = vld [vmem:[%s1 + $0x28] sm:$0xff]
    %v35 = vld [vmem:[%s1 + $0x30] sm:$0xff]
    %v36 = vld [vmem:[%s1 + $0x38] sm:$0xff]
    %v37 = vld [vmem:[%s1 + $0x40] sm:$0xff]
    %v38 = vld [vmem:[%s1 + $0x48] sm:$0xff]
    %v39 = vld [vmem:[%s1 + $0x50] sm:$0xff]
    %v40 = vld [vmem:[%s1 + $0x58] sm:$0xff]
    %v41 = vld [vmem:[%s1 + $0x60] sm:$0xff]
    %v42 = vld [vmem:[%s1 + $0x68] sm:$0xff]
    %v43 = vld [vmem:[%s1 + $0x70] sm:$0xff]
    %v44 = vld [vmem:[%s1 + $0x78] sm:$0xff]
    %v45 = vld [vmem:[%s2] sm:$0xff]
    %v46 = vld [vmem:[%s2 + $0x8] sm:$0xff]
    %v47 = vld [vmem:[%s2 + $0x10] sm:$0xff]
    %v48 = vld [vmem:[%s2 + $0x18] sm:$0xff]
    %v49 = vld [vmem:[%s2 + $0x20] sm:$0xff]
    %v50 = vld [vmem:[%s2 + $0x28] sm:$0xff]
    %v51 = vld [vmem:[%s2 + $0x30] sm:$0xff]
    %v52 = vld [vmem:[%s2 + $0x38] sm:$0xff]
    %v53 = vld [vmem:[%s2 + $0x40] sm:$0xff]
    %v54 = vld [vmem:[%s2 + $0x48] sm:$0xff]
    %v55 = vld [vmem:[%s2 + $0x50] sm:$0xff]
    %v56 = vld [vmem:[%s2 + $0x58] sm:$0xff]
    %v57 = vld [vmem:[%s2 + $0x60] sm:$0xff]
    %v58 = vld [vmem:[%s2 + $0x68] sm:$0xff]
    %v59 = vld [vmem:[%s2 + $0x70] sm:$0xff]
    %v60 = vld [vmem:[%s2 + $0x78] sm:$0xff]
    %v61 = vld [vmem:[%s3] sm:$0xff]
    %v62 = vld [vmem:[%s3 + $0x8] sm:$0xff]
    %v63 = vld [vmem:[%s3 + $0x10] sm:$0xff]
    %v64 = vld [vmem:[%s3 + $0x18] sm:$0xff]
    %v65 = vld [vmem:[%s4] sm:$0x1]
    %v67 = vlaneseq
    %v68 = vshrl.u32 %v67, 7
    %v69 = vsub.s32 0, %v68
    %v70 = vrot.slane %v65, %v69
    %vm72 = vcmask 261120
    %v74 = vsel %vm72, %v27, 0
    %v77 = vsel %vm72, %v28, 0
    %v80 = vsel %vm72, %v61, 0
    %v83 = vsel %vm72, %v62, 0
    %v86 = vsel %vm72, %v63, 0
    %v89 = vsel %vm72, %v64, 0
    %91 = vmatprep.subr.mxu0 0.0
    %92 = vmatpush1.xpose.msra.mxu0 0.0
    %93 = vmatprep.subr.mxu0 0.0
    %94 = vmatpush1.xpose.msra.mxu0 0.0
    %95 = vmatprep.subr.mxu0 0.0
    %96 = vmatpush1.xpose.msra.mxu0 0.0
    %97 = vmatprep.subr.mxu0 0.0
    %98 = vmatpush1.xpose.msra.mxu0 0.0
    %99 = vmatprep.subr.mxu0 0.0
    %100 = vmatpush1.xpose.msra.mxu0 0.0
    %101 = vmatprep.subr.mxu0 0.0
    %102 = vmatpush1.xpose.msra.mxu0 0.0
    %103 = vmatprep.subr.mxu0 0.0
    %104 = vmatpush1.xpose.msra.mxu0 0.0
    %105 = vmatprep.subr.mxu0 0.0
    %106 = vmatpush1.xpose.msra.mxu0 0.0
    %107 = vmatprep.subr.mxu0 0.0
    %108 = vmatpush1.xpose.msra.mxu0 0.0
    %109 = vmatprep.subr.mxu0 0.0
    %110 = vmatpush1.xpose.msra.mxu0 0.0
    %111 = vmatprep.subr.mxu0 0.0
    %112 = vmatpush1.xpose.msra.mxu0 0.0
    %113 = vmatprep.subr.mxu0 0.0
    %114 = vmatpush1.xpose.msra.mxu0 0.0
    %115 = vmatprep.subr.mxu0 0.0
    %116 = vmatpush1.xpose.msra.mxu0 %v89
    %117 = vmatprep.subr.mxu0 0.0
    %118 = vmatpush1.xpose.msra.mxu0 %v86
    %119 = vmatprep.subr.mxu0 0.0
    %120 = vmatpush1.xpose.msra.mxu0 %v83
    %121 = vmatprep.subr.mxu0 0.0
    %122 = vmatpush1.xpose.msra.mxu0 %v80
    %123 = vmatprep.subr.mxu0 0.0
    %124 = vmatpush2.xpose.msra.mxu0 0.0
    %125 = vmatprep.subr.mxu0 0.0
    %126 = vmatpush2.xpose.msra.mxu0 0.0
    %127 = vmatprep.subr.mxu0 0.0
    %128 = vmatpush2.xpose.msra.mxu0 0.0
    %129 = vmatprep.subr.mxu0 0.0
    %130 = vmatpush2.xpose.msra.mxu0 0.0
    %131 = vmatprep.subr.mxu0 0.0
    %132 = vmatpush2.xpose.msra.mxu0 0.0
    %133 = vmatprep.subr.mxu0 0.0
    %134 = vmatpush2.xpose.msra.mxu0 0.0
    %135 = vmatprep.subr.mxu0 0.0
    %136 = vmatpush2.xpose.msra.mxu0 0.0
    %137 = vmatprep.subr.mxu0 0.0
    %138 = vmatpush2.xpose.msra.mxu0 0.0
    %139 = vmatprep.subr.mxu0 0.0
    %140 = vmatpush2.xpose.msra.mxu0 0.0
    %141 = vmatprep.subr.mxu0 0.0
    %142 = vmatpush2.xpose.msra.mxu0 0.0
    %143 = vmatprep.subr.mxu0 0.0
    %144 = vmatpush2.xpose.msra.mxu0 0.0
    %145 = vmatprep.subr.mxu0 0.0
    %146 = vmatpush2.xpose.msra.mxu0 0.0
    %147 = vmatprep.subr.mxu0 0.0
    %148 = vmatpush2.xpose.msra.mxu0 0.0
    %149 = vmatprep.subr.mxu0 0.0
    %150 = vmatpush2.xpose.msra.mxu0 0.0
    %151 = vmatprep.subr.mxu0 0.0
    %152 = vmatpush2.xpose.msra.mxu0 0.0
    %153 = vmatprep.subr.mxu0 0.0
    %154 = vmatpush2.xpose.msra.mxu0 0.0
    %155 = vmatprep.mubr.f32.mxu0 0.0
    %156 = vmatmul.mubr.f32.gmra.mxu0 %v74
    %v157 = vpop.f32.mrf.mxu0
    %v158 = vadd.f32 %v70, %v157
    %v159 = vpop.f32.mrf.mxu0
    %160 = vmatprep.mubr.f32.mxu0 0.0
    %161 = vmatmul.mubr.f32.gmra.mxu0 %v77
    %v162 = vpop.f32.mrf.mxu0
    %v163 = vadd.f32 %v70, %v162
    %v164 = vpop.f32.mrf.mxu0
    %165 = vdwg.mxu0
    %v166 = vmul.f32 %v158, 0.35355338
    %v167 = vmul.f32 %v163, 0.35355338
    %170 = vrot.lane.b32.xlu0 %v166, 120
    %v171 = vpop.permute.xlu0 %170
    %172 = vrot.lane.b32.xlu0 %v167, 120
    %v173 = vpop.permute.xlu0 %172
    %176 = vrot.lane.b32.xlu0 %v166, 112
    %v177 = vpop.permute.xlu0 %176
    %178 = vrot.lane.b32.xlu0 %v167, 112
    %v179 = vpop.permute.xlu0 %178
    %182 = vrot.lane.b32.xlu0 %v166, 104
    %v183 = vpop.permute.xlu0 %182
    %184 = vrot.lane.b32.xlu0 %v167, 104
    %v185 = vpop.permute.xlu0 %184
    %v188 = vcombine.low %v166, %v177
    %v189 = vcombine.high %v166, %v177
    %v191 = vunpack.c.l.s4 1983009808
    %v192 = vunpack.c.0.s8 %v191
    %v193 = vlaneseq
    %v194 = vshrl.u32 %v193, 7
    %v195 = vsub.s32 %v192, %v194
    %v196 = vrot.slane %v188, %v195
    %v198 = vunpack.c.l.s4 1983009808
    %v199 = vunpack.c.0.s8 %v198
    %v200 = vlaneseq
    %v201 = vshrl.u32 %v200, 7
    %v202 = vsub.s32 %v199, %v201
    %v203 = vrot.slane %v189, %v202
    %v204 = vcombine.low %v171, %v183
    %v205 = vcombine.high %v171, %v183
    %v207 = vunpack.c.l.s4 1983009808
    %v208 = vunpack.c.0.s8 %v207
    %v209 = vlaneseq
    %v210 = vshrl.u32 %v209, 7
    %v211 = vsub.s32 %v208, %v210
    %v212 = vrot.slane %v204, %v211
    %v214 = vunpack.c.l.s4 1983009808
    %v215 = vunpack.c.0.s8 %v214
    %v216 = vlaneseq
    %v217 = vshrl.u32 %v216, 7
    %v218 = vsub.s32 %v215, %v217
    %v219 = vrot.slane %v205, %v218
    %v220 = vcombine.low %v196, %v212
    %v221 = vcombine.high %v196, %v212
    %v223 = vunpack.c.l.s4 1934713408
    %v224 = vunpack.c.0.s8 %v223
    %v225 = vlaneseq
    %v226 = vshrl.u32 %v225, 7
    %v227 = vsub.s32 %v224, %v226
    %v228 = vrot.slane %v220, %v227
    %v230 = vunpack.c.l.s4 1934713408
    %v231 = vunpack.c.0.s8 %v230
    %v232 = vlaneseq
    %v233 = vshrl.u32 %v232, 7
    %v234 = vsub.s32 %v231, %v233
    %v235 = vrot.slane %v221, %v234
    %v236 = vcombine.low %v203, %v219
    %v237 = vcombine.high %v203, %v219
    %v239 = vunpack.c.l.s4 1934713408
    %v240 = vunpack.c.0.s8 %v239
    %v241 = vlaneseq
    %v242 = vshrl.u32 %v241, 7
    %v243 = vsub.s32 %v240, %v242
    %v244 = vrot.slane %v236, %v243
    %v246 = vunpack.c.l.s4 1934713408
    %v247 = vunpack.c.0.s8 %v246
    %v248 = vlaneseq
    %v249 = vshrl.u32 %v248, 7
    %v250 = vsub.s32 %v247, %v249
    %v251 = vrot.slane %v237, %v250
    %v252 = vcombine.high %v228, 0.0
    %v253 = vcombine.high %v235, 0.0
    %v254 = vcombine.high %v244, 0.0
    %v255 = vcombine.high %v251, 0.0
    %v256 = vcombine.low %v167, %v179
    %v257 = vcombine.high %v167, %v179
    %v259 = vunpack.c.l.s4 1983009808
    %v260 = vunpack.c.0.s8 %v259
    %v261 = vlaneseq
    %v262 = vshrl.u32 %v261, 7
    %v263 = vsub.s32 %v260, %v262
    %v264 = vrot.slane %v256, %v263
    %v266 = vunpack.c.l.s4 1983009808
    %v267 = vunpack.c.0.s8 %v266
    %v268 = vlaneseq
    %v269 = vshrl.u32 %v268, 7
    %v270 = vsub.s32 %v267, %v269
    %v271 = vrot.slane %v257, %v270
    %v272 = vcombine.low %v173, %v185
    %v273 = vcombine.high %v173, %v185
    %v275 = vunpack.c.l.s4 1983009808
    %v276 = vunpack.c.0.s8 %v275
    %v277 = vlaneseq
    %v278 = vshrl.u32 %v277, 7
    %v279 = vsub.s32 %v276, %v278
    %v280 = vrot.slane %v272, %v279
    %v282 = vunpack.c.l.s4 1983009808
    %v283 = vunpack.c.0.s8 %v282
    %v284 = vlaneseq
    %v285 = vshrl.u32 %v284, 7
    %v286 = vsub.s32 %v283, %v285
    %v287 = vrot.slane %v273, %v286
    %v288 = vcombine.low %v264, %v280
    %v289 = vcombine.high %v264, %v280
    %v291 = vunpack.c.l.s4 1934713408
    %v292 = vunpack.c.0.s8 %v291
    %v293 = vlaneseq
    %v294 = vshrl.u32 %v293, 7
    %v295 = vsub.s32 %v292, %v294
    %v296 = vrot.slane %v288, %v295
    %v298 = vunpack.c.l.s4 1934713408
    %v299 = vunpack.c.0.s8 %v298
    %v300 = vlaneseq
    %v301 = vshrl.u32 %v300, 7
    %v302 = vsub.s32 %v299, %v301
    %v303 = vrot.slane %v289, %v302
    %v304 = vcombine.low %v271, %v287
    %v305 = vcombine.high %v271, %v287
    %v307 = vunpack.c.l.s4 1934713408
    %v308 = vunpack.c.0.s8 %v307
    %v309 = vlaneseq
    %v310 = vshrl.u32 %v309, 7
    %v311 = vsub.s32 %v308, %v310
    %v312 = vrot.slane %v304, %v311
    %v314 = vunpack.c.l.s4 1934713408
    %v315 = vunpack.c.0.s8 %v314
    %v316 = vlaneseq
    %v317 = vshrl.u32 %v316, 7
    %v318 = vsub.s32 %v315, %v317
    %v319 = vrot.slane %v305, %v318
    %v320 = vcombine.high %v296, 0.0
    %v321 = vcombine.high %v303, 0.0
    %v322 = vcombine.high %v312, 0.0
    %v323 = vcombine.high %v319, 0.0
    %vm324 = vcmask 64512
    %v326 = vsel %vm324, %v228, 0
    %v329 = vsel %vm324, %v29, 0
    %331 = vmatprep.subr.mxu0 0.0
    %332 = vmatpush1.xpose.msra.mxu0 0.0
    %333 = vmatprep.subr.mxu0 0.0
    %334 = vmatpush1.xpose.msra.mxu0 0.0
    %335 = vmatprep.subr.mxu0 0.0
    %336 = vmatpush1.xpose.msra.mxu0 0.0
    %337 = vmatprep.subr.mxu0 0.0
    %338 = vmatpush1.xpose.msra.mxu0 0.0
    %339 = vmatprep.subr.mxu0 0.0
    %340 = vmatpush1.xpose.msra.mxu0 0.0
    %341 = vmatprep.subr.mxu0 0.0
    %342 = vmatpush1.xpose.msra.mxu0 0.0
    %343 = vmatprep.subr.mxu0 0.0
    %344 = vmatpush1.xpose.msra.mxu0 0.0
    %345 = vmatprep.subr.mxu0 0.0
    %346 = vmatpush1.xpose.msra.mxu0 0.0
    %347 = vmatprep.subr.mxu0 0.0
    %348 = vmatpush1.xpose.msra.mxu0 0.0
    %349 = vmatprep.subr.mxu0 0.0
    %350 = vmatpush1.xpose.msra.mxu0 0.0
    %351 = vmatprep.subr.mxu0 0.0
    %352 = vmatpush1.xpose.msra.mxu0 0.0
    %353 = vmatprep.subr.mxu0 0.0
    %354 = vmatpush1.xpose.msra.mxu0 0.0
    %355 = vmatprep.subr.mxu0 0.0
    %356 = vmatpush1.xpose.msra.mxu0 0.0
    %357 = vmatprep.subr.mxu0 0.0
    %358 = vmatpush1.xpose.msra.mxu0 0.0
    %359 = vmatprep.subr.mxu0 0.0
    %360 = vmatpush1.xpose.msra.mxu0 0.0
    %361 = vmatprep.subr.mxu0 0.0
    %362 = vmatpush1.xpose.msra.mxu0 %v329
    %363 = vmatprep.subr.mxu0 0.0
    %364 = vmatpush2.xpose.msra.mxu0 0.0
    %365 = vmatprep.subr.mxu0 0.0
    %366 = vmatpush2.xpose.msra.mxu0 0.0
    %367 = vmatprep.subr.mxu0 0.0
    %368 = vmatpush2.xpose.msra.mxu0 0.0
    %369 = vmatprep.subr.mxu0 0.0
    %370 = vmatpush2.xpose.msra.mxu0 0.0
    %371 = vmatprep.subr.mxu0 0.0
    %372 = vmatpush2.xpose.msra.mxu0 0.0
    %373 = vmatprep.subr.mxu0 0.0
    %374 = vmatpush2.xpose.msra.mxu0 0.0
    %375 = vmatprep.subr.mxu0 0.0
    %376 = vmatpush2.xpose.msra.mxu0 0.0
    %377 = vmatprep.subr.mxu0 0.0
    %378 = vmatpush2.xpose.msra.mxu0 0.0
    %379 = vmatprep.subr.mxu0 0.0
    %380 = vmatpush2.xpose.msra.mxu0 0.0
    %381 = vmatprep.subr.mxu0 0.0
    %382 = vmatpush2.xpose.msra.mxu0 0.0
    %383 = vmatprep.subr.mxu0 0.0
    %384 = vmatpush2.xpose.msra.mxu0 0.0
    %385 = vmatprep.subr.mxu0 0.0
    %386 = vmatpush2.xpose.msra.mxu0 0.0
    %387 = vmatprep.subr.mxu0 0.0
    %388 = vmatpush2.xpose.msra.mxu0 0.0
    %389 = vmatprep.subr.mxu0 0.0
    %390 = vmatpush2.xpose.msra.mxu0 0.0
    %391 = vmatprep.subr.mxu0 0.0
    %392 = vmatpush2.xpose.msra.mxu0 0.0
    %393 = vmatprep.subr.mxu0 0.0
    %394 = vmatpush2.xpose.msra.mxu0 0.0
    %395 = vmatprep.mubr.f32.mxu0 0.0
    %396 = vmatmul.mubr.f32.gmra.mxu0 %v326
    %v397 = vpop.f32.mrf.mxu0
    %v398 = vadd.f32 0.0, %v397
    %v399 = vpop.f32.mrf.mxu0
    %400 = vdwg.mxu0
    %v402 = vsel %vm324, %v252, 0
    %v405 = vsel %vm324, %v30, 0
    %407 = vmatprep.subr.mxu0 0.0
    %408 = vmatpush1.xpose.msra.mxu0 0.0
    %409 = vmatprep.subr.mxu0 0.0
    %410 = vmatpush1.xpose.msra.mxu0 0.0
    %411 = vmatprep.subr.mxu0 0.0
    %412 = vmatpush1.xpose.msra.mxu0 0.0
    %413 = vmatprep.subr.mxu0 0.0
    %414 = vmatpush1.xpose.msra.mxu0 0.0
    %415 = vmatprep.subr.mxu0 0.0
    %416 = vmatpush1.xpose.msra.mxu0 0.0
    %417 = vmatprep.subr.mxu0 0.0
    %418 = vmatpush1.xpose.msra.mxu0 0.0
    %419 = vmatprep.subr.mxu0 0.0
    %420 = vmatpush1.xpose.msra.mxu0 0.0
    %421 = vmatprep.subr.mxu0 0.0
    %422 = vmatpush1.xpose.msra.mxu0 0.0
    %423 = vmatprep.subr.mxu0 0.0
    %424 = vmatpush1.xpose.msra.mxu0 0.0
    %425 = vmatprep.subr.mxu0 0.0
    %426 = vmatpush1.xpose.msra.mxu0 0.0
    %427 = vmatprep.subr.mxu0 0.0
    %428 = vmatpush1.xpose.msra.mxu0 0.0
    %429 = vmatprep.subr.mxu0 0.0
    %430 = vmatpush1.xpose.msra.mxu0 0.0
    %431 = vmatprep.subr.mxu0 0.0
    %432 = vmatpush1.xpose.msra.mxu0 0.0
    %433 = vmatprep.subr.mxu0 0.0
    %434 = vmatpush1.xpose.msra.mxu0 0.0
    %435 = vmatprep.subr.mxu0 0.0
    %436 = vmatpush1.xpose.msra.mxu0 0.0
    %437 = vmatprep.subr.mxu0 0.0
    %438 = vmatpush1.xpose.msra.mxu0 %v405
    %439 = vmatprep.subr.mxu0 0.0
    %440 = vmatpush2.xpose.msra.mxu0 0.0
    %441 = vmatprep.subr.mxu0 0.0
    %442 = vmatpush2.xpose.msra.mxu0 0.0
    %443 = vmatprep.subr.mxu0 0.0
    %444 = vmatpush2.xpose.msra.mxu0 0.0
    %445 = vmatprep.subr.mxu0 0.0
    %446 = vmatpush2.xpose.msra.mxu0 0.0
    %447 = vmatprep.subr.mxu0 0.0
    %448 = vmatpush2.xpose.msra.mxu0 0.0
    %449 = vmatprep.subr.mxu0 0.0
    %450 = vmatpush2.xpose.msra.mxu0 0.0
    %451 = vmatprep.subr.mxu0 0.0
    %452 = vmatpush2.xpose.msra.mxu0 0.0
    %453 = vmatprep.subr.mxu0 0.0
    %454 = vmatpush2.xpose.msra.mxu0 0.0
    %455 = vmatprep.subr.mxu0 0.0
    %456 = vmatpush2.xpose.msra.mxu0 0.0
    %457 = vmatprep.subr.mxu0 0.0
    %458 = vmatpush2.xpose.msra.mxu0 0.0
    %459 = vmatprep.subr.mxu0 0.0
    %460 = vmatpush2.xpose.msra.mxu0 0.0
    %461 = vmatprep.subr.mxu0 0.0
    %462 = vmatpush2.xpose.msra.mxu0 0.0
    %463 = vmatprep.subr.mxu0 0.0
    %464 = vmatpush2.xpose.msra.mxu0 0.0
    %465 = vmatprep.subr.mxu0 0.0
    %466 = vmatpush2.xpose.msra.mxu0 0.0
    %467 = vmatprep.subr.mxu0 0.0
    %468 = vmatpush2.xpose.msra.mxu0 0.0
    %469 = vmatprep.subr.mxu0 0.0
    %470 = vmatpush2.xpose.msra.mxu0 0.0
    %471 = vmatprep.mubr.f32.mxu0 0.0
    %472 = vmatmul.mubr.f32.gmra.mxu0 %v402
    %v473 = vpop.f32.mrf.mxu0
    %v474 = vadd.f32 0.0, %v473
    %v475 = vpop.f32.mrf.mxu0
    %476 = vdwg.mxu0
    %v478 = vsel %vm324, %v235, 0
    %v481 = vsel %vm324, %v31, 0
    %483 = vmatprep.subr.mxu0 0.0
    %484 = vmatpush1.xpose.msra.mxu0 0.0
    %485 = vmatprep.subr.mxu0 0.0
    %486 = vmatpush1.xpose.msra.mxu0 0.0
    %487 = vmatprep.subr.mxu0 0.0
    %488 = vmatpush1.xpose.msra.mxu0 0.0
    %489 = vmatprep.subr.mxu0 0.0
    %490 = vmatpush1.xpose.msra.mxu0 0.0
    %491 = vmatprep.subr.mxu0 0.0
    %492 = vmatpush1.xpose.msra.mxu0 0.0
    %493 = vmatprep.subr.mxu0 0.0
    %494 = vmatpush1.xpose.msra.mxu0 0.0
    %495 = vmatprep.subr.mxu0 0.0
    %496 = vmatpush1.xpose.msra.mxu0 0.0
    %497 = vmatprep.subr.mxu0 0.0
    %498 = vmatpush1.xpose.msra.mxu0 0.0
    %499 = vmatprep.subr.mxu0 0.0
    %500 = vmatpush1.xpose.msra.mxu0 0.0
    %501 = vmatprep.subr.mxu0 0.0
    %502 = vmatpush1.xpose.msra.mxu0 0.0
    %503 = vmatprep.subr.mxu0 0.0
    %504 = vmatpush1.xpose.msra.mxu0 0.0
    %505 = vmatprep.subr.mxu0 0.0
    %506 = vmatpush1.xpose.msra.mxu0 0.0
    %507 = vmatprep.subr.mxu0 0.0
    %508 = vmatpush1.xpose.msra.mxu0 0.0
    %509 = vmatprep.subr.mxu0 0.0
    %510 = vmatpush1.xpose.msra.mxu0 0.0
    %511 = vmatprep.subr.mxu0 0.0
    %512 = vmatpush1.xpose.msra.mxu0 0.0
    %513 = vmatprep.subr.mxu0 0.0
    %514 = vmatpush1.xpose.msra.mxu0 %v481
    %515 = vmatprep.subr.mxu0 0.0
    %516 = vmatpush2.xpose.msra.mxu0 0.0
    %517 = vmatprep.subr.mxu0 0.0
    %518 = vmatpush2.xpose.msra.mxu0 0.0
    %519 = vmatprep.subr.mxu0 0.0
    %520 = vmatpush2.xpose.msra.mxu0 0.0
    %521 = vmatprep.subr.mxu0 0.0
    %522 = vmatpush2.xpose.msra.mxu0 0.0
    %523 = vmatprep.subr.mxu0 0.0
    %524 = vmatpush2.xpose.msra.mxu0 0.0
    %525 = vmatprep.subr.mxu0 0.0
    %526 = vmatpush2.xpose.msra.mxu0 0.0
    %527 = vmatprep.subr.mxu0 0.0
    %528 = vmatpush2.xpose.msra.mxu0 0.0
    %529 = vmatprep.subr.mxu0 0.0
    %530 = vmatpush2.xpose.msra.mxu0 0.0
    %531 = vmatprep.subr.mxu0 0.0
    %532 = vmatpush2.xpose.msra.mxu0 0.0
    %533 = vmatprep.subr.mxu0 0.0
    %534 = vmatpush2.xpose.msra.mxu0 0.0
    %535 = vmatprep.subr.mxu0 0.0
    %536 = vmatpush2.xpose.msra.mxu0 0.0
    %537 = vmatprep.subr.mxu0 0.0
    %538 = vmatpush2.xpose.msra.mxu0 0.0
    %539 = vmatprep.subr.mxu0 0.0
    %540 = vmatpush2.xpose.msra.mxu0 0.0
    %541 = vmatprep.subr.mxu0 0.0
    %542 = vmatpush2.xpose.msra.mxu0 0.0
    %543 = vmatprep.subr.mxu0 0.0
    %544 = vmatpush2.xpose.msra.mxu0 0.0
    %545 = vmatprep.subr.mxu0 0.0
    %546 = vmatpush2.xpose.msra.mxu0 0.0
    %547 = vmatprep.mubr.f32.mxu0 0.0
    %548 = vmatmul.mubr.f32.gmra.mxu0 %v478
    %v549 = vpop.f32.mrf.mxu0
    %v550 = vadd.f32 0.0, %v549
    %v551 = vpop.f32.mrf.mxu0
    %552 = vdwg.mxu0
    %v554 = vsel %vm324, %v253, 0
    %v557 = vsel %vm324, %v32, 0
    %559 = vmatprep.subr.mxu0 0.0
    %560 = vmatpush1.xpose.msra.mxu0 0.0
    %561 = vmatprep.subr.mxu0 0.0
    %562 = vmatpush1.xpose.msra.mxu0 0.0
    %563 = vmatprep.subr.mxu0 0.0
    %564 = vmatpush1.xpose.msra.mxu0 0.0
    %565 = vmatprep.subr.mxu0 0.0
    %566 = vmatpush1.xpose.msra.mxu0 0.0
    %567 = vmatprep.subr.mxu0 0.0
    %568 = vmatpush1.xpose.msra.mxu0 0.0
    %569 = vmatprep.subr.mxu0 0.0
    %570 = vmatpush1.xpose.msra.mxu0 0.0
    %571 = vmatprep.subr.mxu0 0.0
    %572 = vmatpush1.xpose.msra.mxu0 0.0
    %573 = vmatprep.subr.mxu0 0.0
    %574 = vmatpush1.xpose.msra.mxu0 0.0
    %575 = vmatprep.subr.mxu0 0.0
    %576 = vmatpush1.xpose.msra.mxu0 0.0
    %577 = vmatprep.subr.mxu0 0.0
    %578 = vmatpush1.xpose.msra.mxu0 0.0
    %579 = vmatprep.subr.mxu0 0.0
    %580 = vmatpush1.xpose.msra.mxu0 0.0
    %581 = vmatprep.subr.mxu0 0.0
    %582 = vmatpush1.xpose.msra.mxu0 0.0
    %583 = vmatprep.subr.mxu0 0.0
    %584 = vmatpush1.xpose.msra.mxu0 0.0
    %585 = vmatprep.subr.mxu0 0.0
    %586 = vmatpush1.xpose.msra.mxu0 0.0
    %587 = vmatprep.subr.mxu0 0.0
    %588 = vmatpush1.xpose.msra.mxu0 0.0
    %589 = vmatprep.subr.mxu0 0.0
    %590 = vmatpush1.xpose.msra.mxu0 %v557
    %591 = vmatprep.subr.mxu0 0.0
    %592 = vmatpush2.xpose.msra.mxu0 0.0
    %593 = vmatprep.subr.mxu0 0.0
    %594 = vmatpush2.xpose.msra.mxu0 0.0
    %595 = vmatprep.subr.mxu0 0.0
    %596 = vmatpush2.xpose.msra.mxu0 0.0
    %597 = vmatprep.subr.mxu0 0.0
    %598 = vmatpush2.xpose.msra.mxu0 0.0
    %599 = vmatprep.subr.mxu0 0.0
    %600 = vmatpush2.xpose.msra.mxu0 0.0
    %601 = vmatprep.subr.mxu0 0.0
    %602 = vmatpush2.xpose.msra.mxu0 0.0
    %603 = vmatprep.subr.mxu0 0.0
    %604 = vmatpush2.xpose.msra.mxu0 0.0
    %605 = vmatprep.subr.mxu0 0.0
    %606 = vmatpush2.xpose.msra.mxu0 0.0
    %607 = vmatprep.subr.mxu0 0.0
    %608 = vmatpush2.xpose.msra.mxu0 0.0
    %609 = vmatprep.subr.mxu0 0.0
    %610 = vmatpush2.xpose.msra.mxu0 0.0
    %611 = vmatprep.subr.mxu0 0.0
    %612 = vmatpush2.xpose.msra.mxu0 0.0
    %613 = vmatprep.subr.mxu0 0.0
    %614 = vmatpush2.xpose.msra.mxu0 0.0
    %615 = vmatprep.subr.mxu0 0.0
    %616 = vmatpush2.xpose.msra.mxu0 0.0
    %617 = vmatprep.subr.mxu0 0.0
    %618 = vmatpush2.xpose.msra.mxu0 0.0
    %619 = vmatprep.subr.mxu0 0.0
    %620 = vmatpush2.xpose.msra.mxu0 0.0
    %621 = vmatprep.subr.mxu0 0.0
    %622 = vmatpush2.xpose.msra.mxu0 0.0
    %623 = vmatprep.mubr.f32.mxu0 0.0
    %624 = vmatmul.mubr.f32.gmra.mxu0 %v554
    %v625 = vpop.f32.mrf.mxu0
    %v626 = vadd.f32 0.0, %v625
    %v627 = vpop.f32.mrf.mxu0
    %628 = vdwg.mxu0
    %v630 = vsel %vm324, %v244, 0
    %v633 = vsel %vm324, %v33, 0
    %635 = vmatprep.subr.mxu0 0.0
    %636 = vmatpush1.xpose.msra.mxu0 0.0
    %637 = vmatprep.subr.mxu0 0.0
    %638 = vmatpush1.xpose.msra.mxu0 0.0
    %639 = vmatprep.subr.mxu0 0.0
    %640 = vmatpush1.xpose.msra.mxu0 0.0
    %641 = vmatprep.subr.mxu0 0.0
    %642 = vmatpush1.xpose.msra.mxu0 0.0
    %643 = vmatprep.subr.mxu0 0.0
    %644 = vmatpush1.xpose.msra.mxu0 0.0
    %645 = vmatprep.subr.mxu0 0.0
    %646 = vmatpush1.xpose.msra.mxu0 0.0
    %647 = vmatprep.subr.mxu0 0.0
    %648 = vmatpush1.xpose.msra.mxu0 0.0
    %649 = vmatprep.subr.mxu0 0.0
    %650 = vmatpush1.xpose.msra.mxu0 0.0
    %651 = vmatprep.subr.mxu0 0.0
    %652 = vmatpush1.xpose.msra.mxu0 0.0
    %653 = vmatprep.subr.mxu0 0.0
    %654 = vmatpush1.xpose.msra.mxu0 0.0
    %655 = vmatprep.subr.mxu0 0.0
    %656 = vmatpush1.xpose.msra.mxu0 0.0
    %657 = vmatprep.subr.mxu0 0.0
    %658 = vmatpush1.xpose.msra.mxu0 0.0
    %659 = vmatprep.subr.mxu0 0.0
    %660 = vmatpush1.xpose.msra.mxu0 0.0
    %661 = vmatprep.subr.mxu0 0.0
    %662 = vmatpush1.xpose.msra.mxu0 0.0
    %663 = vmatprep.subr.mxu0 0.0
    %664 = vmatpush1.xpose.msra.mxu0 0.0
    %665 = vmatprep.subr.mxu0 0.0
    %666 = vmatpush1.xpose.msra.mxu0 %v633
    %667 = vmatprep.subr.mxu0 0.0
    %668 = vmatpush2.xpose.msra.mxu0 0.0
    %669 = vmatprep.subr.mxu0 0.0
    %670 = vmatpush2.xpose.msra.mxu0 0.0
    %671 = vmatprep.subr.mxu0 0.0
    %672 = vmatpush2.xpose.msra.mxu0 0.0
    %673 = vmatprep.subr.mxu0 0.0
    %674 = vmatpush2.xpose.msra.mxu0 0.0
    %675 = vmatprep.subr.mxu0 0.0
    %676 = vmatpush2.xpose.msra.mxu0 0.0
    %677 = vmatprep.subr.mxu0 0.0
    %678 = vmatpush2.xpose.msra.mxu0 0.0
    %679 = vmatprep.subr.mxu0 0.0
    %680 = vmatpush2.xpose.msra.mxu0 0.0
    %681 = vmatprep.subr.mxu0 0.0
    %682 = vmatpush2.xpose.msra.mxu0 0.0
    %683 = vmatprep.subr.mxu0 0.0
    %684 = vmatpush2.xpose.msra.mxu0 0.0
    %685 = vmatprep.subr.mxu0 0.0
    %686 = vmatpush2.xpose.msra.mxu0 0.0
    %687 = vmatprep.subr.mxu0 0.0
    %688 = vmatpush2.xpose.msra.mxu0 0.0
    %689 = vmatprep.subr.mxu0 0.0
    %690 = vmatpush2.xpose.msra.mxu0 0.0
    %691 = vmatprep.subr.mxu0 0.0
    %692 = vmatpush2.xpose.msra.mxu0 0.0
    %693 = vmatprep.subr.mxu0 0.0
    %694 = vmatpush2.xpose.msra.mxu0 0.0
    %695 = vmatprep.subr.mxu0 0.0
    %696 = vmatpush2.xpose.msra.mxu0 0.0
    %697 = vmatprep.subr.mxu0 0.0
    %698 = vmatpush2.xpose.msra.mxu0 0.0
    %699 = vmatprep.mubr.f32.mxu0 0.0
    %700 = vmatmul.mubr.f32.gmra.mxu0 %v630
    %v701 = vpop.f32.mrf.mxu0
    %v702 = vadd.f32 0.0, %v701
    %v703 = vpop.f32.mrf.mxu0
    %704 = vdwg.mxu0
    %v706 = vsel %vm324, %v254, 0
    %v709 = vsel %vm324, %v34, 0
    %711 = vmatprep.subr.mxu0 0.0
    %712 = vmatpush1.xpose.msra.mxu0 0.0
    %713 = vmatprep.subr.mxu0 0.0
    %714 = vmatpush1.xpose.msra.mxu0 0.0
    %715 = vmatprep.subr.mxu0 0.0
    %716 = vmatpush1.xpose.msra.mxu0 0.0
    %717 = vmatprep.subr.mxu0 0.0
    %718 = vmatpush1.xpose.msra.mxu0 0.0
    %719 = vmatprep.subr.mxu0 0.0
    %720 = vmatpush1.xpose.msra.mxu0 0.0
    %721 = vmatprep.subr.mxu0 0.0
    %722 = vmatpush1.xpose.msra.mxu0 0.0
    %723 = vmatprep.subr.mxu0 0.0
    %724 = vmatpush1.xpose.msra.mxu0 0.0
    %725 = vmatprep.subr.mxu0 0.0
    %726 = vmatpush1.xpose.msra.mxu0 0.0
    %727 = vmatprep.subr.mxu0 0.0
    %728 = vmatpush1.xpose.msra.mxu0 0.0
    %729 = vmatprep.subr.mxu0 0.0
    %730 = vmatpush1.xpose.msra.mxu0 0.0
    %731 = vmatprep.subr.mxu0 0.0
    %732 = vmatpush1.xpose.msra.mxu0 0.0
    %733 = vmatprep.subr.mxu0 0.0
    %734 = vmatpush1.xpose.msra.mxu0 0.0
    %735 = vmatprep.subr.mxu0 0.0
    %736 = vmatpush1.xpose.msra.mxu0 0.0
    %737 = vmatprep.subr.mxu0 0.0
    %738 = vmatpush1.xpose.msra.mxu0 0.0
    %739 = vmatprep.subr.mxu0 0.0
    %740 = vmatpush1.xpose.msra.mxu0 0.0
    %741 = vmatprep.subr.mxu0 0.0
    %742 = vmatpush1.xpose.msra.mxu0 %v709
    %743 = vmatprep.subr.mxu0 0.0
    %744 = vmatpush2.xpose.msra.mxu0 0.0
    %745 = vmatprep.subr.mxu0 0.0
    %746 = vmatpush2.xpose.msra.mxu0 0.0
    %747 = vmatprep.subr.mxu0 0.0
    %748 = vmatpush2.xpose.msra.mxu0 0.0
    %749 = vmatprep.subr.mxu0 0.0
    %750 = vmatpush2.xpose.msra.mxu0 0.0
    %751 = vmatprep.subr.mxu0 0.0
    %752 = vmatpush2.xpose.msra.mxu0 0.0
    %753 = vmatprep.subr.mxu0 0.0
    %754 = vmatpush2.xpose.msra.mxu0 0.0
    %755 = vmatprep.subr.mxu0 0.0
    %756 = vmatpush2.xpose.msra.mxu0 0.0
    %757 = vmatprep.subr.mxu0 0.0
    %758 = vmatpush2.xpose.msra.mxu0 0.0
    %759 = vmatprep.subr.mxu0 0.0
    %760 = vmatpush2.xpose.msra.mxu0 0.0
    %761 = vmatprep.subr.mxu0 0.0
    %762 = vmatpush2.xpose.msra.mxu0 0.0
    %763 = vmatprep.subr.mxu0 0.0
    %764 = vmatpush2.xpose.msra.mxu0 0.0
    %765 = vmatprep.subr.mxu0 0.0
    %766 = vmatpush2.xpose.msra.mxu0 0.0
    %767 = vmatprep.subr.mxu0 0.0
    %768 = vmatpush2.xpose.msra.mxu0 0.0
    %769 = vmatprep.subr.mxu0 0.0
    %770 = vmatpush2.xpose.msra.mxu0 0.0
    %771 = vmatprep.subr.mxu0 0.0
    %772 = vmatpush2.xpose.msra.mxu0 0.0
    %773 = vmatprep.subr.mxu0 0.0
    %774 = vmatpush2.xpose.msra.mxu0 0.0
    %775 = vmatprep.mubr.f32.mxu0 0.0
    %776 = vmatmul.mubr.f32.gmra.mxu0 %v706
    %v777 = vpop.f32.mrf.mxu0
    %v778 = vadd.f32 0.0, %v777
    %v779 = vpop.f32.mrf.mxu0
    %780 = vdwg.mxu0
    %v782 = vsel %vm324, %v251, 0
    %v785 = vsel %vm324, %v35, 0
    %787 = vmatprep.subr.mxu0 0.0
    %788 = vmatpush1.xpose.msra.mxu0 0.0
    %789 = vmatprep.subr.mxu0 0.0
    %790 = vmatpush1.xpose.msra.mxu0 0.0
    %791 = vmatprep.subr.mxu0 0.0
    %792 = vmatpush1.xpose.msra.mxu0 0.0
    %793 = vmatprep.subr.mxu0 0.0
    %794 = vmatpush1.xpose.msra.mxu0 0.0
    %795 = vmatprep.subr.mxu0 0.0
    %796 = vmatpush1.xpose.msra.mxu0 0.0
    %797 = vmatprep.subr.mxu0 0.0
    %798 = vmatpush1.xpose.msra.mxu0 0.0
    %799 = vmatprep.subr.mxu0 0.0
    %800 = vmatpush1.xpose.msra.mxu0 0.0
    %801 = vmatprep.subr.mxu0 0.0
    %802 = vmatpush1.xpose.msra.mxu0 0.0
    %803 = vmatprep.subr.mxu0 0.0
    %804 = vmatpush1.xpose.msra.mxu0 0.0
    %805 = vmatprep.subr.mxu0 0.0
    %806 = vmatpush1.xpose.msra.mxu0 0.0
    %807 = vmatprep.subr.mxu0 0.0
    %808 = vmatpush1.xpose.msra.mxu0 0.0
    %809 = vmatprep.subr.mxu0 0.0
    %810 = vmatpush1.xpose.msra.mxu0 0.0
    %811 = vmatprep.subr.mxu0 0.0
    %812 = vmatpush1.xpose.msra.mxu0 0.0
    %813 = vmatprep.subr.mxu0 0.0
    %814 = vmatpush1.xpose.msra.mxu0 0.0
    %815 = vmatprep.subr.mxu0 0.0
    %816 = vmatpush1.xpose.msra.mxu0 0.0
    %817 = vmatprep.subr.mxu0 0.0
    %818 = vmatpush1.xpose.msra.mxu0 %v785
    %819 = vmatprep.subr.mxu0 0.0
    %820 = vmatpush2.xpose.msra.mxu0 0.0
    %821 = vmatprep.subr.mxu0 0.0
    %822 = vmatpush2.xpose.msra.mxu0 0.0
    %823 = vmatprep.subr.mxu0 0.0
    %824 = vmatpush2.xpose.msra.mxu0 0.0
    %825 = vmatprep.subr.mxu0 0.0
    %826 = vmatpush2.xpose.msra.mxu0 0.0
    %827 = vmatprep.subr.mxu0 0.0
    %828 = vmatpush2.xpose.msra.mxu0 0.0
    %829 = vmatprep.subr.mxu0 0.0
    %830 = vmatpush2.xpose.msra.mxu0 0.0
    %831 = vmatprep.subr.mxu0 0.0
    %832 = vmatpush2.xpose.msra.mxu0 0.0
    %833 = vmatprep.subr.mxu0 0.0
    %834 = vmatpush2.xpose.msra.mxu0 0.0
    %835 = vmatprep.subr.mxu0 0.0
    %836 = vmatpush2.xpose.msra.mxu0 0.0
    %837 = vmatprep.subr.mxu0 0.0
    %838 = vmatpush2.xpose.msra.mxu0 0.0
    %839 = vmatprep.subr.mxu0 0.0
    %840 = vmatpush2.xpose.msra.mxu0 0.0
    %841 = vmatprep.subr.mxu0 0.0
    %842 = vmatpush2.xpose.msra.mxu0 0.0
    %843 = vmatprep.subr.mxu0 0.0
    %844 = vmatpush2.xpose.msra.mxu0 0.0
    %845 = vmatprep.subr.mxu0 0.0
    %846 = vmatpush2.xpose.msra.mxu0 0.0
    %847 = vmatprep.subr.mxu0 0.0
    %848 = vmatpush2.xpose.msra.mxu0 0.0
    %849 = vmatprep.subr.mxu0 0.0
    %850 = vmatpush2.xpose.msra.mxu0 0.0
    %851 = vmatprep.mubr.f32.mxu0 0.0
    %852 = vmatmul.mubr.f32.gmra.mxu0 %v782
    %v853 = vpop.f32.mrf.mxu0
    %v854 = vadd.f32 0.0, %v853
    %v855 = vpop.f32.mrf.mxu0
    %856 = vdwg.mxu0
    %v858 = vsel %vm324, %v255, 0
    %v861 = vsel %vm324, %v36, 0
    %863 = vmatprep.subr.mxu0 0.0
    %864 = vmatpush1.xpose.msra.mxu0 0.0
    %865 = vmatprep.subr.mxu0 0.0
    %866 = vmatpush1.xpose.msra.mxu0 0.0
    %867 = vmatprep.subr.mxu0 0.0
    %868 = vmatpush1.xpose.msra.mxu0 0.0
    %869 = vmatprep.subr.mxu0 0.0
    %870 = vmatpush1.xpose.msra.mxu0 0.0
    %871 = vmatprep.subr.mxu0 0.0
    %872 = vmatpush1.xpose.msra.mxu0 0.0
    %873 = vmatprep.subr.mxu0 0.0
    %874 = vmatpush1.xpose.msra.mxu0 0.0
    %875 = vmatprep.subr.mxu0 0.0
    %876 = vmatpush1.xpose.msra.mxu0 0.0
    %877 = vmatprep.subr.mxu0 0.0
    %878 = vmatpush1.xpose.msra.mxu0 0.0
    %879 = vmatprep.subr.mxu0 0.0
    %880 = vmatpush1.xpose.msra.mxu0 0.0
    %881 = vmatprep.subr.mxu0 0.0
    %882 = vmatpush1.xpose.msra.mxu0 0.0
    %883 = vmatprep.subr.mxu0 0.0
    %884 = vmatpush1.xpose.msra.mxu0 0.0
    %885 = vmatprep.subr.mxu0 0.0
    %886 = vmatpush1.xpose.msra.mxu0 0.0
    %887 = vmatprep.subr.mxu0 0.0
    %888 = vmatpush1.xpose.msra.mxu0 0.0
    %889 = vmatprep.subr.mxu0 0.0
    %890 = vmatpush1.xpose.msra.mxu0 0.0
    %891 = vmatprep.subr.mxu0 0.0
    %892 = vmatpush1.xpose.msra.mxu0 0.0
    %893 = vmatprep.subr.mxu0 0.0
    %894 = vmatpush1.xpose.msra.mxu0 %v861
    %895 = vmatprep.subr.mxu0 0.0
    %896 = vmatpush2.xpose.msra.mxu0 0.0
    %897 = vmatprep.subr.mxu0 0.0
    %898 = vmatpush2.xpose.msra.mxu0 0.0
    %899 = vmatprep.subr.mxu0 0.0
    %900 = vmatpush2.xpose.msra.mxu0 0.0
    %901 = vmatprep.subr.mxu0 0.0
    %902 = vmatpush2.xpose.msra.mxu0 0.0
    %903 = vmatprep.subr.mxu0 0.0
    %904 = vmatpush2.xpose.msra.mxu0 0.0
    %905 = vmatprep.subr.mxu0 0.0
    %906 = vmatpush2.xpose.msra.mxu0 0.0
    %907 = vmatprep.subr.mxu0 0.0
    %908 = vmatpush2.xpose.msra.mxu0 0.0
    %909 = vmatprep.subr.mxu0 0.0
    %910 = vmatpush2.xpose.msra.mxu0 0.0
    %911 = vmatprep.subr.mxu0 0.0
    %912 = vmatpush2.xpose.msra.mxu0 0.0
    %913 = vmatprep.subr.mxu0 0.0
    %914 = vmatpush2.xpose.msra.mxu0 0.0
    %915 = vmatprep.subr.mxu0 0.0
    %916 = vmatpush2.xpose.msra.mxu0 0.0
    %917 = vmatprep.subr.mxu0 0.0
    %918 = vmatpush2.xpose.msra.mxu0 0.0
    %919 = vmatprep.subr.mxu0 0.0
    %920 = vmatpush2.xpose.msra.mxu0 0.0
    %921 = vmatprep.subr.mxu0 0.0
    %922 = vmatpush2.xpose.msra.mxu0 0.0
    %923 = vmatprep.subr.mxu0 0.0
    %924 = vmatpush2.xpose.msra.mxu0 0.0
    %925 = vmatprep.subr.mxu0 0.0
    %926 = vmatpush2.xpose.msra.mxu0 0.0
    %927 = vmatprep.mubr.f32.mxu0 0.0
    %928 = vmatmul.mubr.f32.gmra.mxu0 %v858
    %v929 = vpop.f32.mrf.mxu0
    %v930 = vadd.f32 0.0, %v929
    %v931 = vpop.f32.mrf.mxu0
    %932 = vdwg.mxu0
    %v934 = vsel %vm324, %v296, 0
    %v937 = vsel %vm324, %v37, 0
    %939 = vmatprep.subr.mxu0 0.0
    %940 = vmatpush1.xpose.msra.mxu0 0.0
    %941 = vmatprep.subr.mxu0 0.0
    %942 = vmatpush1.xpose.msra.mxu0 0.0
    %943 = vmatprep.subr.mxu0 0.0
    %944 = vmatpush1.xpose.msra.mxu0 0.0
    %945 = vmatprep.subr.mxu0 0.0
    %946 = vmatpush1.xpose.msra.mxu0 0.0
    %947 = vmatprep.subr.mxu0 0.0
    %948 = vmatpush1.xpose.msra.mxu0 0.0
    %949 = vmatprep.subr.mxu0 0.0
    %950 = vmatpush1.xpose.msra.mxu0 0.0
    %951 = vmatprep.subr.mxu0 0.0
    %952 = vmatpush1.xpose.msra.mxu0 0.0
    %953 = vmatprep.subr.mxu0 0.0
    %954 = vmatpush1.xpose.msra.mxu0 0.0
    %955 = vmatprep.subr.mxu0 0.0
    %956 = vmatpush1.xpose.msra.mxu0 0.0
    %957 = vmatprep.subr.mxu0 0.0
    %958 = vmatpush1.xpose.msra.mxu0 0.0
    %959 = vmatprep.subr.mxu0 0.0
    %960 = vmatpush1.xpose.msra.mxu0 0.0
    %961 = vmatprep.subr.mxu0 0.0
    %962 = vmatpush1.xpose.msra.mxu0 0.0
    %963 = vmatprep.subr.mxu0 0.0
    %964 = vmatpush1.xpose.msra.mxu0 0.0
    %965 = vmatprep.subr.mxu0 0.0
    %966 = vmatpush1.xpose.msra.mxu0 0.0
    %967 = vmatprep.subr.mxu0 0.0
    %968 = vmatpush1.xpose.msra.mxu0 0.0
    %969 = vmatprep.subr.mxu0 0.0
    %970 = vmatpush1.xpose.msra.mxu0 %v937
    %971 = vmatprep.subr.mxu0 0.0
    %972 = vmatpush2.xpose.msra.mxu0 0.0
    %973 = vmatprep.subr.mxu0 0.0
    %974 = vmatpush2.xpose.msra.mxu0 0.0
    %975 = vmatprep.subr.mxu0 0.0
    %976 = vmatpush2.xpose.msra.mxu0 0.0
    %977 = vmatprep.subr.mxu0 0.0
    %978 = vmatpush2.xpose.msra.mxu0 0.0
    %979 = vmatprep.subr.mxu0 0.0
    %980 = vmatpush2.xpose.msra.mxu0 0.0
    %981 = vmatprep.subr.mxu0 0.0
    %982 = vmatpush2.xpose.msra.mxu0 0.0
    %983 = vmatprep.subr.mxu0 0.0
    %984 = vmatpush2.xpose.msra.mxu0 0.0
    %985 = vmatprep.subr.mxu0 0.0
    %986 = vmatpush2.xpose.msra.mxu0 0.0
    %987 = vmatprep.subr.mxu0 0.0
    %988 = vmatpush2.xpose.msra.mxu0 0.0
    %989 = vmatprep.subr.mxu0 0.0
    %990 = vmatpush2.xpose.msra.mxu0 0.0
    %991 = vmatprep.subr.mxu0 0.0
    %992 = vmatpush2.xpose.msra.mxu0 0.0
    %993 = vmatprep.subr.mxu0 0.0
    %994 = vmatpush2.xpose.msra.mxu0 0.0
    %995 = vmatprep.subr.mxu0 0.0
    %996 = vmatpush2.xpose.msra.mxu0 0.0
    %997 = vmatprep.subr.mxu0 0.0
    %998 = vmatpush2.xpose.msra.mxu0 0.0
    %999 = vmatprep.subr.mxu0 0.0
    %1000 = vmatpush2.xpose.msra.mxu0 0.0
    %1001 = vmatprep.subr.mxu0 0.0
    %1002 = vmatpush2.xpose.msra.mxu0 0.0
    %1003 = vmatprep.mubr.f32.mxu0 0.0
    %1004 = vmatmul.mubr.f32.gmra.mxu0 %v934
    %v1005 = vpop.f32.mrf.mxu0
    %v1006 = vadd.f32 0.0, %v1005
    %v1007 = vpop.f32.mrf.mxu0
    %1008 = vdwg.mxu0
    %v1010 = vsel %vm324, %v320, 0
    %v1013 = vsel %vm324, %v38, 0
    %1015 = vmatprep.subr.mxu0 0.0
    %1016 = vmatpush1.xpose.msra.mxu0 0.0
    %1017 = vmatprep.subr.mxu0 0.0
    %1018 = vmatpush1.xpose.msra.mxu0 0.0
    %1019 = vmatprep.subr.mxu0 0.0
    %1020 = vmatpush1.xpose.msra.mxu0 0.0
    %1021 = vmatprep.subr.mxu0 0.0
    %1022 = vmatpush1.xpose.msra.mxu0 0.0
    %1023 = vmatprep.subr.mxu0 0.0
    %1024 = vmatpush1.xpose.msra.mxu0 0.0
    %1025 = vmatprep.subr.mxu0 0.0
    %1026 = vmatpush1.xpose.msra.mxu0 0.0
    %1027 = vmatprep.subr.mxu0 0.0
    %1028 = vmatpush1.xpose.msra.mxu0 0.0
    %1029 = vmatprep.subr.mxu0 0.0
    %1030 = vmatpush1.xpose.msra.mxu0 0.0
    %1031 = vmatprep.subr.mxu0 0.0
    %1032 = vmatpush1.xpose.msra.mxu0 0.0
    %1033 = vmatprep.subr.mxu0 0.0
    %1034 = vmatpush1.xpose.msra.mxu0 0.0
    %1035 = vmatprep.subr.mxu0 0.0
    %1036 = vmatpush1.xpose.msra.mxu0 0.0
    %1037 = vmatprep.subr.mxu0 0.0
    %1038 = vmatpush1.xpose.msra.mxu0 0.0
    %1039 = vmatprep.subr.mxu0 0.0
    %1040 = vmatpush1.xpose.msra.mxu0 0.0
    %1041 = vmatprep.subr.mxu0 0.0
    %1042 = vmatpush1.xpose.msra.mxu0 0.0
    %1043 = vmatprep.subr.mxu0 0.0
    %1044 = vmatpush1.xpose.msra.mxu0 0.0
    %1045 = vmatprep.subr.mxu0 0.0
    %1046 = vmatpush1.xpose.msra.mxu0 %v1013
    %1047 = vmatprep.subr.mxu0 0.0
    %1048 = vmatpush2.xpose.msra.mxu0 0.0
    %1049 = vmatprep.subr.mxu0 0.0
    %1050 = vmatpush2.xpose.msra.mxu0 0.0
    %1051 = vmatprep.subr.mxu0 0.0
    %1052 = vmatpush2.xpose.msra.mxu0 0.0
    %1053 = vmatprep.subr.mxu0 0.0
    %1054 = vmatpush2.xpose.msra.mxu0 0.0
    %1055 = vmatprep.subr.mxu0 0.0
    %1056 = vmatpush2.xpose.msra.mxu0 0.0
    %1057 = vmatprep.subr.mxu0 0.0
    %1058 = vmatpush2.xpose.msra.mxu0 0.0
    %1059 = vmatprep.subr.mxu0 0.0
    %1060 = vmatpush2.xpose.msra.mxu0 0.0
    %1061 = vmatprep.subr.mxu0 0.0
    %1062 = vmatpush2.xpose.msra.mxu0 0.0
    %1063 = vmatprep.subr.mxu0 0.0
    %1064 = vmatpush2.xpose.msra.mxu0 0.0
    %1065 = vmatprep.subr.mxu0 0.0
    %1066 = vmatpush2.xpose.msra.mxu0 0.0
    %1067 = vmatprep.subr.mxu0 0.0
    %1068 = vmatpush2.xpose.msra.mxu0 0.0
    %1069 = vmatprep.subr.mxu0 0.0
    %1070 = vmatpush2.xpose.msra.mxu0 0.0
    %1071 = vmatprep.subr.mxu0 0.0
    %1072 = vmatpush2.xpose.msra.mxu0 0.0
    %1073 = vmatprep.subr.mxu0 0.0
    %1074 = vmatpush2.xpose.msra.mxu0 0.0
    %1075 = vmatprep.subr.mxu0 0.0
    %1076 = vmatpush2.xpose.msra.mxu0 0.0
    %1077 = vmatprep.subr.mxu0 0.0
    %1078 = vmatpush2.xpose.msra.mxu0 0.0
    %1079 = vmatprep.mubr.f32.mxu0 0.0
    %1080 = vmatmul.mubr.f32.gmra.mxu0 %v1010
    %v1081 = vpop.f32.mrf.mxu0
    %v1082 = vadd.f32 0.0, %v1081
    %v1083 = vpop.f32.mrf.mxu0
    %1084 = vdwg.mxu0
    %v1086 = vsel %vm324, %v303, 0
    %v1089 = vsel %vm324, %v39, 0
    %1091 = vmatprep.subr.mxu0 0.0
    %1092 = vmatpush1.xpose.msra.mxu0 0.0
    %1093 = vmatprep.subr.mxu0 0.0
    %1094 = vmatpush1.xpose.msra.mxu0 0.0
    %1095 = vmatprep.subr.mxu0 0.0
    %1096 = vmatpush1.xpose.msra.mxu0 0.0
    %1097 = vmatprep.subr.mxu0 0.0
    %1098 = vmatpush1.xpose.msra.mxu0 0.0
    %1099 = vmatprep.subr.mxu0 0.0
    %1100 = vmatpush1.xpose.msra.mxu0 0.0
    %1101 = vmatprep.subr.mxu0 0.0
    %1102 = vmatpush1.xpose.msra.mxu0 0.0
    %1103 = vmatprep.subr.mxu0 0.0
    %1104 = vmatpush1.xpose.msra.mxu0 0.0
    %1105 = vmatprep.subr.mxu0 0.0
    %1106 = vmatpush1.xpose.msra.mxu0 0.0
    %1107 = vmatprep.subr.mxu0 0.0
    %1108 = vmatpush1.xpose.msra.mxu0 0.0
    %1109 = vmatprep.subr.mxu0 0.0
    %1110 = vmatpush1.xpose.msra.mxu0 0.0
    %1111 = vmatprep.subr.mxu0 0.0
    %1112 = vmatpush1.xpose.msra.mxu0 0.0
    %1113 = vmatprep.subr.mxu0 0.0
    %1114 = vmatpush1.xpose.msra.mxu0 0.0
    %1115 = vmatprep.subr.mxu0 0.0
    %1116 = vmatpush1.xpose.msra.mxu0 0.0
    %1117 = vmatprep.subr.mxu0 0.0
    %1118 = vmatpush1.xpose.msra.mxu0 0.0
    %1119 = vmatprep.subr.mxu0 0.0
    %1120 = vmatpush1.xpose.msra.mxu0 0.0
    %1121 = vmatprep.subr.mxu0 0.0
    %1122 = vmatpush1.xpose.msra.mxu0 %v1089
    %1123 = vmatprep.subr.mxu0 0.0
    %1124 = vmatpush2.xpose.msra.mxu0 0.0
    %1125 = vmatprep.subr.mxu0 0.0
    %1126 = vmatpush2.xpose.msra.mxu0 0.0
    %1127 = vmatprep.subr.mxu0 0.0
    %1128 = vmatpush2.xpose.msra.mxu0 0.0
    %1129 = vmatprep.subr.mxu0 0.0
    %1130 = vmatpush2.xpose.msra.mxu0 0.0
    %1131 = vmatprep.subr.mxu0 0.0
    %1132 = vmatpush2.xpose.msra.mxu0 0.0
    %1133 = vmatprep.subr.mxu0 0.0
    %1134 = vmatpush2.xpose.msra.mxu0 0.0
    %1135 = vmatprep.subr.mxu0 0.0
    %1136 = vmatpush2.xpose.msra.mxu0 0.0
    %1137 = vmatprep.subr.mxu0 0.0
    %1138 = vmatpush2.xpose.msra.mxu0 0.0
    %1139 = vmatprep.subr.mxu0 0.0
    %1140 = vmatpush2.xpose.msra.mxu0 0.0
    %1141 = vmatprep.subr.mxu0 0.0
    %1142 = vmatpush2.xpose.msra.mxu0 0.0
    %1143 = vmatprep.subr.mxu0 0.0
    %1144 = vmatpush2.xpose.msra.mxu0 0.0
    %1145 = vmatprep.subr.mxu0 0.0
    %1146 = vmatpush2.xpose.msra.mxu0 0.0
    %1147 = vmatprep.subr.mxu0 0.0
    %1148 = vmatpush2.xpose.msra.mxu0 0.0
    %1149 = vmatprep.subr.mxu0 0.0
    %1150 = vmatpush2.xpose.msra.mxu0 0.0
    %1151 = vmatprep.subr.mxu0 0.0
    %1152 = vmatpush2.xpose.msra.mxu0 0.0
    %1153 = vmatprep.subr.mxu0 0.0
    %1154 = vmatpush2.xpose.msra.mxu0 0.0
    %1155 = vmatprep.mubr.f32.mxu0 0.0
    %1156 = vmatmul.mubr.f32.gmra.mxu0 %v1086
    %v1157 = vpop.f32.mrf.mxu0
    %v1158 = vadd.f32 0.0, %v1157
    %v1159 = vpop.f32.mrf.mxu0
    %1160 = vdwg.mxu0
    %v1162 = vsel %vm324, %v321, 0
    %v1165 = vsel %vm324, %v40, 0
    %1167 = vmatprep.subr.mxu0 0.0
    %1168 = vmatpush1.xpose.msra.mxu0 0.0
    %1169 = vmatprep.subr.mxu0 0.0
    %1170 = vmatpush1.xpose.msra.mxu0 0.0
    %1171 = vmatprep.subr.mxu0 0.0
    %1172 = vmatpush1.xpose.msra.mxu0 0.0
    %1173 = vmatprep.subr.mxu0 0.0
    %1174 = vmatpush1.xpose.msra.mxu0 0.0
    %1175 = vmatprep.subr.mxu0 0.0
    %1176 = vmatpush1.xpose.msra.mxu0 0.0
    %1177 = vmatprep.subr.mxu0 0.0
    %1178 = vmatpush1.xpose.msra.mxu0 0.0
    %1179 = vmatprep.subr.mxu0 0.0
    %1180 = vmatpush1.xpose.msra.mxu0 0.0
    %1181 = vmatprep.subr.mxu0 0.0
    %1182 = vmatpush1.xpose.msra.mxu0 0.0
    %1183 = vmatprep.subr.mxu0 0.0
    %1184 = vmatpush1.xpose.msra.mxu0 0.0
    %1185 = vmatprep.subr.mxu0 0.0
    %1186 = vmatpush1.xpose.msra.mxu0 0.0
    %1187 = vmatprep.subr.mxu0 0.0
    %1188 = vmatpush1.xpose.msra.mxu0 0.0
    %1189 = vmatprep.subr.mxu0 0.0
    %1190 = vmatpush1.xpose.msra.mxu0 0.0
    %1191 = vmatprep.subr.mxu0 0.0
    %1192 = vmatpush1.xpose.msra.mxu0 0.0
    %1193 = vmatprep.subr.mxu0 0.0
    %1194 = vmatpush1.xpose.msra.mxu0 0.0
    %1195 = vmatprep.subr.mxu0 0.0
    %1196 = vmatpush1.xpose.msra.mxu0 0.0
    %1197 = vmatprep.subr.mxu0 0.0
    %1198 = vmatpush1.xpose.msra.mxu0 %v1165
    %1199 = vmatprep.subr.mxu0 0.0
    %1200 = vmatpush2.xpose.msra.mxu0 0.0
    %1201 = vmatprep.subr.mxu0 0.0
    %1202 = vmatpush2.xpose.msra.mxu0 0.0
    %1203 = vmatprep.subr.mxu0 0.0
    %1204 = vmatpush2.xpose.msra.mxu0 0.0
    %1205 = vmatprep.subr.mxu0 0.0
    %1206 = vmatpush2.xpose.msra.mxu0 0.0
    %1207 = vmatprep.subr.mxu0 0.0
    %1208 = vmatpush2.xpose.msra.mxu0 0.0
    %1209 = vmatprep.subr.mxu0 0.0
    %1210 = vmatpush2.xpose.msra.mxu0 0.0
    %1211 = vmatprep.subr.mxu0 0.0
    %1212 = vmatpush2.xpose.msra.mxu0 0.0
    %1213 = vmatprep.subr.mxu0 0.0
    %1214 = vmatpush2.xpose.msra.mxu0 0.0
    %1215 = vmatprep.subr.mxu0 0.0
    %1216 = vmatpush2.xpose.msra.mxu0 0.0
    %1217 = vmatprep.subr.mxu0 0.0
    %1218 = vmatpush2.xpose.msra.mxu0 0.0
    %1219 = vmatprep.subr.mxu0 0.0
    %1220 = vmatpush2.xpose.msra.mxu0 0.0
    %1221 = vmatprep.subr.mxu0 0.0
    %1222 = vmatpush2.xpose.msra.mxu0 0.0
    %1223 = vmatprep.subr.mxu0 0.0
    %1224 = vmatpush2.xpose.msra.mxu0 0.0
    %1225 = vmatprep.subr.mxu0 0.0
    %1226 = vmatpush2.xpose.msra.mxu0 0.0
    %1227 = vmatprep.subr.mxu0 0.0
    %1228 = vmatpush2.xpose.msra.mxu0 0.0
    %1229 = vmatprep.subr.mxu0 0.0
    %1230 = vmatpush2.xpose.msra.mxu0 0.0
    %1231 = vmatprep.mubr.f32.mxu0 0.0
    %1232 = vmatmul.mubr.f32.gmra.mxu0 %v1162
    %v1233 = vpop.f32.mrf.mxu0
    %v1234 = vadd.f32 0.0, %v1233
    %v1235 = vpop.f32.mrf.mxu0
    %1236 = vdwg.mxu0
    %v1238 = vsel %vm324, %v312, 0
    %v1241 = vsel %vm324, %v41, 0
    %1243 = vmatprep.subr.mxu0 0.0
    %1244 = vmatpush1.xpose.msra.mxu0 0.0
    %1245 = vmatprep.subr.mxu0 0.0
    %1246 = vmatpush1.xpose.msra.mxu0 0.0
    %1247 = vmatprep.subr.mxu0 0.0
    %1248 = vmatpush1.xpose.msra.mxu0 0.0
    %1249 = vmatprep.subr.mxu0 0.0
    %1250 = vmatpush1.xpose.msra.mxu0 0.0
    %1251 = vmatprep.subr.mxu0 0.0
    %1252 = vmatpush1.xpose.msra.mxu0 0.0
    %1253 = vmatprep.subr.mxu0 0.0
    %1254 = vmatpush1.xpose.msra.mxu0 0.0
    %1255 = vmatprep.subr.mxu0 0.0
    %1256 = vmatpush1.xpose.msra.mxu0 0.0
    %1257 = vmatprep.subr.mxu0 0.0
    %1258 = vmatpush1.xpose.msra.mxu0 0.0
    %1259 = vmatprep.subr.mxu0 0.0
    %1260 = vmatpush1.xpose.msra.mxu0 0.0
    %1261 = vmatprep.subr.mxu0 0.0
    %1262 = vmatpush1.xpose.msra.mxu0 0.0
    %1263 = vmatprep.subr.mxu0 0.0
    %1264 = vmatpush1.xpose.msra.mxu0 0.0
    %1265 = vmatprep.subr.mxu0 0.0
    %1266 = vmatpush1.xpose.msra.mxu0 0.0
    %1267 = vmatprep.subr.mxu0 0.0
    %1268 = vmatpush1.xpose.msra.mxu0 0.0
    %1269 = vmatprep.subr.mxu0 0.0
    %1270 = vmatpush1.xpose.msra.mxu0 0.0
    %1271 = vmatprep.subr.mxu0 0.0
    %1272 = vmatpush1.xpose.msra.mxu0 0.0
    %1273 = vmatprep.subr.mxu0 0.0
    %1274 = vmatpush1.xpose.msra.mxu0 %v1241
    %1275 = vmatprep.subr.mxu0 0.0
    %1276 = vmatpush2.xpose.msra.mxu0 0.0
    %1277 = vmatprep.subr.mxu0 0.0
    %1278 = vmatpush2.xpose.msra.mxu0 0.0
    %1279 = vmatprep.subr.mxu0 0.0
    %1280 = vmatpush2.xpose.msra.mxu0 0.0
    %1281 = vmatprep.subr.mxu0 0.0
    %1282 = vmatpush2.xpose.msra.mxu0 0.0
    %1283 = vmatprep.subr.mxu0 0.0
    %1284 = vmatpush2.xpose.msra.mxu0 0.0
    %1285 = vmatprep.subr.mxu0 0.0
    %1286 = vmatpush2.xpose.msra.mxu0 0.0
    %1287 = vmatprep.subr.mxu0 0.0
    %1288 = vmatpush2.xpose.msra.mxu0 0.0
    %1289 = vmatprep.subr.mxu0 0.0
    %1290 = vmatpush2.xpose.msra.mxu0 0.0
    %1291 = vmatprep.subr.mxu0 0.0
    %1292 = vmatpush2.xpose.msra.mxu0 0.0
    %1293 = vmatprep.subr.mxu0 0.0
    %1294 = vmatpush2.xpose.msra.mxu0 0.0
    %1295 = vmatprep.subr.mxu0 0.0
    %1296 = vmatpush2.xpose.msra.mxu0 0.0
    %1297 = vmatprep.subr.mxu0 0.0
    %1298 = vmatpush2.xpose.msra.mxu0 0.0
    %1299 = vmatprep.subr.mxu0 0.0
    %1300 = vmatpush2.xpose.msra.mxu0 0.0
    %1301 = vmatprep.subr.mxu0 0.0
    %1302 = vmatpush2.xpose.msra.mxu0 0.0
    %1303 = vmatprep.subr.mxu0 0.0
    %1304 = vmatpush2.xpose.msra.mxu0 0.0
    %1305 = vmatprep.subr.mxu0 0.0
    %1306 = vmatpush2.xpose.msra.mxu0 0.0
    %1307 = vmatprep.mubr.f32.mxu0 0.0
    %1308 = vmatmul.mubr.f32.gmra.mxu0 %v1238
    %v1309 = vpop.f32.mrf.mxu0
    %v1310 = vadd.f32 0.0, %v1309
    %v1311 = vpop.f32.mrf.mxu0
    %1312 = vdwg.mxu0
    %v1314 = vsel %vm324, %v322, 0
    %v1317 = vsel %vm324, %v42, 0
    %1319 = vmatprep.subr.mxu0 0.0
    %1320 = vmatpush1.xpose.msra.mxu0 0.0
    %1321 = vmatprep.subr.mxu0 0.0
    %1322 = vmatpush1.xpose.msra.mxu0 0.0
    %1323 = vmatprep.subr.mxu0 0.0
    %1324 = vmatpush1.xpose.msra.mxu0 0.0
    %1325 = vmatprep.subr.mxu0 0.0
    %1326 = vmatpush1.xpose.msra.mxu0 0.0
    %1327 = vmatprep.subr.mxu0 0.0
    %1328 = vmatpush1.xpose.msra.mxu0 0.0
    %1329 = vmatprep.subr.mxu0 0.0
    %1330 = vmatpush1.xpose.msra.mxu0 0.0
    %1331 = vmatprep.subr.mxu0 0.0
    %1332 = vmatpush1.xpose.msra.mxu0 0.0
    %1333 = vmatprep.subr.mxu0 0.0
    %1334 = vmatpush1.xpose.msra.mxu0 0.0
    %1335 = vmatprep.subr.mxu0 0.0
    %1336 = vmatpush1.xpose.msra.mxu0 0.0
    %1337 = vmatprep.subr.mxu0 0.0
    %1338 = vmatpush1.xpose.msra.mxu0 0.0
    %1339 = vmatprep.subr.mxu0 0.0
    %1340 = vmatpush1.xpose.msra.mxu0 0.0
    %1341 = vmatprep.subr.mxu0 0.0
    %1342 = vmatpush1.xpose.msra.mxu0 0.0
    %1343 = vmatprep.subr.mxu0 0.0
    %1344 = vmatpush1.xpose.msra.mxu0 0.0
    %1345 = vmatprep.subr.mxu0 0.0
    %1346 = vmatpush1.xpose.msra.mxu0 0.0
    %1347 = vmatprep.subr.mxu0 0.0
    %1348 = vmatpush1.xpose.msra.mxu0 0.0
    %1349 = vmatprep.subr.mxu0 0.0
    %1350 = vmatpush1.xpose.msra.mxu0 %v1317
    %1351 = vmatprep.subr.mxu0 0.0
    %1352 = vmatpush2.xpose.msra.mxu0 0.0
    %1353 = vmatprep.subr.mxu0 0.0
    %1354 = vmatpush2.xpose.msra.mxu0 0.0
    %1355 = vmatprep.subr.mxu0 0.0
    %1356 = vmatpush2.xpose.msra.mxu0 0.0
    %1357 = vmatprep.subr.mxu0 0.0
    %1358 = vmatpush2.xpose.msra.mxu0 0.0
    %1359 = vmatprep.subr.mxu0 0.0
    %1360 = vmatpush2.xpose.msra.mxu0 0.0
    %1361 = vmatprep.subr.mxu0 0.0
    %1362 = vmatpush2.xpose.msra.mxu0 0.0
    %1363 = vmatprep.subr.mxu0 0.0
    %1364 = vmatpush2.xpose.msra.mxu0 0.0
    %1365 = vmatprep.subr.mxu0 0.0
    %1366 = vmatpush2.xpose.msra.mxu0 0.0
    %1367 = vmatprep.subr.mxu0 0.0
    %1368 = vmatpush2.xpose.msra.mxu0 0.0
    %1369 = vmatprep.subr.mxu0 0.0
    %1370 = vmatpush2.xpose.msra.mxu0 0.0
    %1371 = vmatprep.subr.mxu0 0.0
    %1372 = vmatpush2.xpose.msra.mxu0 0.0
    %1373 = vmatprep.subr.mxu0 0.0
    %1374 = vmatpush2.xpose.msra.mxu0 0.0
    %1375 = vmatprep.subr.mxu0 0.0
    %1376 = vmatpush2.xpose.msra.mxu0 0.0
    %1377 = vmatprep.subr.mxu0 0.0
    %1378 = vmatpush2.xpose.msra.mxu0 0.0
    %1379 = vmatprep.subr.mxu0 0.0
    %1380 = vmatpush2.xpose.msra.mxu0 0.0
    %1381 = vmatprep.subr.mxu0 0.0
    %1382 = vmatpush2.xpose.msra.mxu0 0.0
    %1383 = vmatprep.mubr.f32.mxu0 0.0
    %1384 = vmatmul.mubr.f32.gmra.mxu0 %v1314
    %v1385 = vpop.f32.mrf.mxu0
    %v1386 = vadd.f32 0.0, %v1385
    %v1387 = vpop.f32.mrf.mxu0
    %1388 = vdwg.mxu0
    %v1390 = vsel %vm324, %v319, 0
    %v1393 = vsel %vm324, %v43, 0
    %1395 = vmatprep.subr.mxu0 0.0
    %1396 = vmatpush1.xpose.msra.mxu0 0.0
    %1397 = vmatprep.subr.mxu0 0.0
    %1398 = vmatpush1.xpose.msra.mxu0 0.0
    %1399 = vmatprep.subr.mxu0 0.0
    %1400 = vmatpush1.xpose.msra.mxu0 0.0
    %1401 = vmatprep.subr.mxu0 0.0
    %1402 = vmatpush1.xpose.msra.mxu0 0.0
    %1403 = vmatprep.subr.mxu0 0.0
    %1404 = vmatpush1.xpose.msra.mxu0 0.0
    %1405 = vmatprep.subr.mxu0 0.0
    %1406 = vmatpush1.xpose.msra.mxu0 0.0
    %1407 = vmatprep.subr.mxu0 0.0
    %1408 = vmatpush1.xpose.msra.mxu0 0.0
    %1409 = vmatprep.subr.mxu0 0.0
    %1410 = vmatpush1.xpose.msra.mxu0 0.0
    %1411 = vmatprep.subr.mxu0 0.0
    %1412 = vmatpush1.xpose.msra.mxu0 0.0
    %1413 = vmatprep.subr.mxu0 0.0
    %1414 = vmatpush1.xpose.msra.mxu0 0.0
    %1415 = vmatprep.subr.mxu0 0.0
    %1416 = vmatpush1.xpose.msra.mxu0 0.0
    %1417 = vmatprep.subr.mxu0 0.0
    %1418 = vmatpush1.xpose.msra.mxu0 0.0
    %1419 = vmatprep.subr.mxu0 0.0
    %1420 = vmatpush1.xpose.msra.mxu0 0.0
    %1421 = vmatprep.subr.mxu0 0.0
    %1422 = vmatpush1.xpose.msra.mxu0 0.0
    %1423 = vmatprep.subr.mxu0 0.0
    %1424 = vmatpush1.xpose.msra.mxu0 0.0
    %1425 = vmatprep.subr.mxu0 0.0
    %1426 = vmatpush1.xpose.msra.mxu0 %v1393
    %1427 = vmatprep.subr.mxu0 0.0
    %1428 = vmatpush2.xpose.msra.mxu0 0.0
    %1429 = vmatprep.subr.mxu0 0.0
    %1430 = vmatpush2.xpose.msra.mxu0 0.0
    %1431 = vmatprep.subr.mxu0 0.0
    %1432 = vmatpush2.xpose.msra.mxu0 0.0
    %1433 = vmatprep.subr.mxu0 0.0
    %1434 = vmatpush2.xpose.msra.mxu0 0.0
    %1435 = vmatprep.subr.mxu0 0.0
    %1436 = vmatpush2.xpose.msra.mxu0 0.0
    %1437 = vmatprep.subr.mxu0 0.0
    %1438 = vmatpush2.xpose.msra.mxu0 0.0
    %1439 = vmatprep.subr.mxu0 0.0
    %1440 = vmatpush2.xpose.msra.mxu0 0.0
    %1441 = vmatprep.subr.mxu0 0.0
    %1442 = vmatpush2.xpose.msra.mxu0 0.0
    %1443 = vmatprep.subr.mxu0 0.0
    %1444 = vmatpush2.xpose.msra.mxu0 0.0
    %1445 = vmatprep.subr.mxu0 0.0
    %1446 = vmatpush2.xpose.msra.mxu0 0.0
    %1447 = vmatprep.subr.mxu0 0.0
    %1448 = vmatpush2.xpose.msra.mxu0 0.0
    %1449 = vmatprep.subr.mxu0 0.0
    %1450 = vmatpush2.xpose.msra.mxu0 0.0
    %1451 = vmatprep.subr.mxu0 0.0
    %1452 = vmatpush2.xpose.msra.mxu0 0.0
    %1453 = vmatprep.subr.mxu0 0.0
    %1454 = vmatpush2.xpose.msra.mxu0 0.0
    %1455 = vmatprep.subr.mxu0 0.0
    %1456 = vmatpush2.xpose.msra.mxu0 0.0
    %1457 = vmatprep.subr.mxu0 0.0
    %1458 = vmatpush2.xpose.msra.mxu0 0.0
    %1459 = vmatprep.mubr.f32.mxu0 0.0
    %1460 = vmatmul.mubr.f32.gmra.mxu0 %v1390
    %v1461 = vpop.f32.mrf.mxu0
    %v1462 = vadd.f32 0.0, %v1461
    %v1463 = vpop.f32.mrf.mxu0
    %1464 = vdwg.mxu0
    %v1466 = vsel %vm324, %v323, 0
    %v1469 = vsel %vm324, %v44, 0
    %1471 = vmatprep.subr.mxu0 0.0
    %1472 = vmatpush1.xpose.msra.mxu0 0.0
    %1473 = vmatprep.subr.mxu0 0.0
    %1474 = vmatpush1.xpose.msra.mxu0 0.0
    %1475 = vmatprep.subr.mxu0 0.0
    %1476 = vmatpush1.xpose.msra.mxu0 0.0
    %1477 = vmatprep.subr.mxu0 0.0
    %1478 = vmatpush1.xpose.msra.mxu0 0.0
    %1479 = vmatprep.subr.mxu0 0.0
    %1480 = vmatpush1.xpose.msra.mxu0 0.0
    %1481 = vmatprep.subr.mxu0 0.0
    %1482 = vmatpush1.xpose.msra.mxu0 0.0
    %1483 = vmatprep.subr.mxu0 0.0
    %1484 = vmatpush1.xpose.msra.mxu0 0.0
    %1485 = vmatprep.subr.mxu0 0.0
    %1486 = vmatpush1.xpose.msra.mxu0 0.0
    %1487 = vmatprep.subr.mxu0 0.0
    %1488 = vmatpush1.xpose.msra.mxu0 0.0
    %1489 = vmatprep.subr.mxu0 0.0
    %1490 = vmatpush1.xpose.msra.mxu0 0.0
    %1491 = vmatprep.subr.mxu0 0.0
    %1492 = vmatpush1.xpose.msra.mxu0 0.0
    %1493 = vmatprep.subr.mxu0 0.0
    %1494 = vmatpush1.xpose.msra.mxu0 0.0
    %1495 = vmatprep.subr.mxu0 0.0
    %1496 = vmatpush1.xpose.msra.mxu0 0.0
    %1497 = vmatprep.subr.mxu0 0.0
    %1498 = vmatpush1.xpose.msra.mxu0 0.0
    %1499 = vmatprep.subr.mxu0 0.0
    %1500 = vmatpush1.xpose.msra.mxu0 0.0
    %1501 = vmatprep.subr.mxu0 0.0
    %1502 = vmatpush1.xpose.msra.mxu0 %v1469
    %1503 = vmatprep.subr.mxu0 0.0
    %1504 = vmatpush2.xpose.msra.mxu0 0.0
    %1505 = vmatprep.subr.mxu0 0.0
    %1506 = vmatpush2.xpose.msra.mxu0 0.0
    %1507 = vmatprep.subr.mxu0 0.0
    %1508 = vmatpush2.xpose.msra.mxu0 0.0
    %1509 = vmatprep.subr.mxu0 0.0
    %1510 = vmatpush2.xpose.msra.mxu0 0.0
    %1511 = vmatprep.subr.mxu0 0.0
    %1512 = vmatpush2.xpose.msra.mxu0 0.0
    %1513 = vmatprep.subr.mxu0 0.0
    %1514 = vmatpush2.xpose.msra.mxu0 0.0
    %1515 = vmatprep.subr.mxu0 0.0
    %1516 = vmatpush2.xpose.msra.mxu0 0.0
    %1517 = vmatprep.subr.mxu0 0.0
    %1518 = vmatpush2.xpose.msra.mxu0 0.0
    %1519 = vmatprep.subr.mxu0 0.0
    %1520 = vmatpush2.xpose.msra.mxu0 0.0
    %1521 = vmatprep.subr.mxu0 0.0
    %1522 = vmatpush2.xpose.msra.mxu0 0.0
    %1523 = vmatprep.subr.mxu0 0.0
    %1524 = vmatpush2.xpose.msra.mxu0 0.0
    %1525 = vmatprep.subr.mxu0 0.0
    %1526 = vmatpush2.xpose.msra.mxu0 0.0
    %1527 = vmatprep.subr.mxu0 0.0
    %1528 = vmatpush2.xpose.msra.mxu0 0.0
    %1529 = vmatprep.subr.mxu0 0.0
    %1530 = vmatpush2.xpose.msra.mxu0 0.0
    %1531 = vmatprep.subr.mxu0 0.0
    %1532 = vmatpush2.xpose.msra.mxu0 0.0
    %1533 = vmatprep.subr.mxu0 0.0
    %1534 = vmatpush2.xpose.msra.mxu0 0.0
    %1535 = vmatprep.mubr.f32.mxu0 0.0
    %1536 = vmatmul.mubr.f32.gmra.mxu0 %v1466
    %v1537 = vpop.f32.mrf.mxu0
    %v1538 = vadd.f32 0.0, %v1537
    %v1539 = vpop.f32.mrf.mxu0
    %1540 = vdwg.mxu0
    %vm1541 = vcmask 60416
    %v1542 = vsel %vm1541, %v398, -inf
    %1543 = vmax.xlane.f32.xlu0 %v1542
    %v1544 = vpop.xlane.xlu0 %1543
    %v1545 = vsel %vm1541, %v474, -inf
    %1546 = vmax.xlane.f32.xlu0 %v1545
    %v1547 = vpop.xlane.xlu0 %1546
    %v1548 = vsel %vm1541, %v550, -inf
    %1549 = vmax.xlane.f32.xlu0 %v1548
    %v1550 = vpop.xlane.xlu0 %1549
    %v1551 = vsel %vm1541, %v626, -inf
    %1552 = vmax.xlane.f32.xlu0 %v1551
    %v1553 = vpop.xlane.xlu0 %1552
    %v1554 = vsel %vm1541, %v702, -inf
    %1555 = vmax.xlane.f32.xlu0 %v1554
    %v1556 = vpop.xlane.xlu0 %1555
    %v1557 = vsel %vm1541, %v778, -inf
    %1558 = vmax.xlane.f32.xlu0 %v1557
    %v1559 = vpop.xlane.xlu0 %1558
    %v1560 = vsel %vm1541, %v854, -inf
    %1561 = vmax.xlane.f32.xlu0 %v1560
    %v1562 = vpop.xlane.xlu0 %1561
    %v1563 = vsel %vm1541, %v930, -inf
    %1564 = vmax.xlane.f32.xlu0 %v1563
    %v1565 = vpop.xlane.xlu0 %1564
    %v1566 = vsel %vm1541, %v1006, -inf
    %1567 = vmax.xlane.f32.xlu0 %v1566
    %v1568 = vpop.xlane.xlu0 %1567
    %v1569 = vsel %vm1541, %v1082, -inf
    %1570 = vmax.xlane.f32.xlu0 %v1569
    %v1571 = vpop.xlane.xlu0 %1570
    %v1572 = vsel %vm1541, %v1158, -inf
    %1573 = vmax.xlane.f32.xlu0 %v1572
    %v1574 = vpop.xlane.xlu0 %1573
    %v1575 = vsel %vm1541, %v1234, -inf
    %1576 = vmax.xlane.f32.xlu0 %v1575
    %v1577 = vpop.xlane.xlu0 %1576
    %v1578 = vsel %vm1541, %v1310, -inf
    %1579 = vmax.xlane.f32.xlu0 %v1578
    %v1580 = vpop.xlane.xlu0 %1579
    %v1581 = vsel %vm1541, %v1386, -inf
    %1582 = vmax.xlane.f32.xlu0 %v1581
    %v1583 = vpop.xlane.xlu0 %1582
    %v1584 = vsel %vm1541, %v1462, -inf
    %1585 = vmax.xlane.f32.xlu0 %v1584
    %v1586 = vpop.xlane.xlu0 %1585
    %v1587 = vsel %vm1541, %v1538, -inf
    %1588 = vmax.xlane.f32.xlu0 %v1587
    %v1589 = vpop.xlane.xlu0 %1588
    %v1590 = vsub.f32 %v398, %v1544
    %v1591 = vsub.f32 %v474, %v1547
    %v1592 = vsub.f32 %v550, %v1550
    %v1593 = vsub.f32 %v626, %v1553
    %v1594 = vsub.f32 %v702, %v1556
    %v1595 = vsub.f32 %v778, %v1559
    %v1596 = vsub.f32 %v854, %v1562
    %v1597 = vsub.f32 %v930, %v1565
    %v1598 = vsub.f32 %v1006, %v1568
    %v1599 = vsub.f32 %v1082, %v1571
    %v1600 = vsub.f32 %v1158, %v1574
    %v1601 = vsub.f32 %v1234, %v1577
    %v1602 = vsub.f32 %v1310, %v1580
    %v1603 = vsub.f32 %v1386, %v1583
    %v1604 = vsub.f32 %v1462, %v1586
    %v1605 = vsub.f32 %v1538, %v1589
    %v1606 = vmul.f32 %v1590, 1.442695
    %v1607 = vpow.pop %v1606
    %v1608 = vmul.f32 %v1591, 1.442695
    %v1609 = vpow.pop %v1608
    %v1610 = vmul.f32 %v1592, 1.442695
    %v1611 = vpow.pop %v1610
    %v1612 = vmul.f32 %v1593, 1.442695
    %v1613 = vpow.pop %v1612
    %v1614 = vmul.f32 %v1594, 1.442695
    %v1615 = vpow.pop %v1614
    %v1616 = vmul.f32 %v1595, 1.442695
    %v1617 = vpow.pop %v1616
    %v1618 = vmul.f32 %v1596, 1.442695
    %v1619 = vpow.pop %v1618
    %v1620 = vmul.f32 %v1597, 1.442695
    %v1621 = vpow.pop %v1620
    %v1622 = vmul.f32 %v1598, 1.442695
    %v1623 = vpow.pop %v1622
    %v1624 = vmul.f32 %v1599, 1.442695
    %v1625 = vpow.pop %v1624
    %v1626 = vmul.f32 %v1600, 1.442695
    %v1627 = vpow.pop %v1626
    %v1628 = vmul.f32 %v1601, 1.442695
    %v1629 = vpow.pop %v1628
    %v1630 = vmul.f32 %v1602, 1.442695
    %v1631 = vpow.pop %v1630
    %v1632 = vmul.f32 %v1603, 1.442695
    %v1633 = vpow.pop %v1632
    %v1634 = vmul.f32 %v1604, 1.442695
    %v1635 = vpow.pop %v1634
    %v1636 = vmul.f32 %v1605, 1.442695
    %v1637 = vpow.pop %v1636
    %v1638 = vsel %vm1541, %v1607, 0.0
    %1639 = vadd.xlane.f32.xlu0 %v1638
    %v1640 = vpop.xlane.xlu0 %1639
    %v1641 = vsel %vm1541, %v1609, 0.0
    %1642 = vadd.xlane.f32.xlu0 %v1641
    %v1643 = vpop.xlane.xlu0 %1642
    %v1644 = vsel %vm1541, %v1611, 0.0
    %1645 = vadd.xlane.f32.xlu0 %v1644
    %v1646 = vpop.xlane.xlu0 %1645
    %v1647 = vsel %vm1541, %v1613, 0.0
    %1648 = vadd.xlane.f32.xlu0 %v1647
    %v1649 = vpop.xlane.xlu0 %1648
    %v1650 = vsel %vm1541, %v1615, 0.0
    %1651 = vadd.xlane.f32.xlu0 %v1650
    %v1652 = vpop.xlane.xlu0 %1651
    %v1653 = vsel %vm1541, %v1617, 0.0
    %1654 = vadd.xlane.f32.xlu0 %v1653
    %v1655 = vpop.xlane.xlu0 %1654
    %v1656 = vsel %vm1541, %v1619, 0.0
    %1657 = vadd.xlane.f32.xlu0 %v1656
    %v1658 = vpop.xlane.xlu0 %1657
    %v1659 = vsel %vm1541, %v1621, 0.0
    %1660 = vadd.xlane.f32.xlu0 %v1659
    %v1661 = vpop.xlane.xlu0 %1660
    %v1662 = vsel %vm1541, %v1623, 0.0
    %1663 = vadd.xlane.f32.xlu0 %v1662
    %v1664 = vpop.xlane.xlu0 %1663
    %v1665 = vsel %vm1541, %v1625, 0.0
    %1666 = vadd.xlane.f32.xlu0 %v1665
    %v1667 = vpop.xlane.xlu0 %1666
    %v1668 = vsel %vm1541, %v1627, 0.0
    %1669 = vadd.xlane.f32.xlu0 %v1668
    %v1670 = vpop.xlane.xlu0 %1669
    %v1671 = vsel %vm1541, %v1629, 0.0
    %1672 = vadd.xlane.f32.xlu0 %v1671
    %v1673 = vpop.xlane.xlu0 %1672
    %v1674 = vsel %vm1541, %v1631, 0.0
    %1675 = vadd.xlane.f32.xlu0 %v1674
    %v1676 = vpop.xlane.xlu0 %1675
    %v1677 = vsel %vm1541, %v1633, 0.0
    %1678 = vadd.xlane.f32.xlu0 %v1677
    %v1679 = vpop.xlane.xlu0 %1678
    %v1680 = vsel %vm1541, %v1635, 0.0
    %1681 = vadd.xlane.f32.xlu0 %v1680
    %v1682 = vpop.xlane.xlu0 %1681
    %v1683 = vsel %vm1541, %v1637, 0.0
    %1684 = vadd.xlane.f32.xlu0 %v1683
    %v1685 = vpop.xlane.xlu0 %1684
    %v1686 = vrcp.pop %v1640
    %v1687 = vrcp.pop %v1643
    %v1688 = vrcp.pop %v1646
    %v1689 = vrcp.pop %v1649
    %v1690 = vrcp.pop %v1652
    %v1691 = vrcp.pop %v1655
    %v1692 = vrcp.pop %v1658
    %v1693 = vrcp.pop %v1661
    %v1694 = vrcp.pop %v1664
    %v1695 = vrcp.pop %v1667
    %v1696 = vrcp.pop %v1670
    %v1697 = vrcp.pop %v1673
    %v1698 = vrcp.pop %v1676
    %v1699 = vrcp.pop %v1679
    %v1700 = vrcp.pop %v1682
    %v1701 = vrcp.pop %v1685
    %v1702 = vmul.f32 %v1607, %v1686
    %v1703 = vmul.f32 %v1609, %v1687
    %v1704 = vmul.f32 %v1611, %v1688
    %v1705 = vmul.f32 %v1613, %v1689
    %v1706 = vmul.f32 %v1615, %v1690
    %v1707 = vmul.f32 %v1617, %v1691
    %v1708 = vmul.f32 %v1619, %v1692
    %v1709 = vmul.f32 %v1621, %v1693
    %v1710 = vmul.f32 %v1623, %v1694
    %v1711 = vmul.f32 %v1625, %v1695
    %v1712 = vmul.f32 %v1627, %v1696
    %v1713 = vmul.f32 %v1629, %v1697
    %v1714 = vmul.f32 %v1631, %v1698
    %v1715 = vmul.f32 %v1633, %v1699
    %v1716 = vmul.f32 %v1635, %v1700
    %v1717 = vmul.f32 %v1637, %v1701
    %v1719 = vsel %vm324, %v1702, 0
    %1721 = vmatprep.subr.mxu0 0.0
    %1722 = vmatpush1.msra.mxu0 0.0
    %1723 = vmatprep.subr.mxu0 0.0
    %1724 = vmatpush1.msra.mxu0 0.0
    %1725 = vmatprep.subr.mxu0 0.0
    %1726 = vmatpush1.msra.mxu0 0.0
    %1727 = vmatprep.subr.mxu0 0.0
    %1728 = vmatpush1.msra.mxu0 0.0
    %1729 = vmatprep.subr.mxu0 0.0
    %1730 = vmatpush1.msra.mxu0 0.0
    %1731 = vmatprep.subr.mxu0 0.0
    %1732 = vmatpush1.msra.mxu0 0.0
    %1733 = vmatprep.subr.mxu0 0.0
    %1734 = vmatpush1.msra.mxu0 0.0
    %1735 = vmatprep.subr.mxu0 0.0
    %1736 = vmatpush1.msra.mxu0 0.0
    %1737 = vmatprep.subr.mxu0 0.0
    %1738 = vmatpush1.msra.mxu0 0.0
    %1739 = vmatprep.subr.mxu0 0.0
    %1740 = vmatpush1.msra.mxu0 0.0
    %1741 = vmatprep.subr.mxu0 0.0
    %1742 = vmatpush1.msra.mxu0 0.0
    %1743 = vmatprep.subr.mxu0 0.0
    %1744 = vmatpush1.msra.mxu0 0.0
    %1745 = vmatprep.subr.mxu0 0.0
    %1746 = vmatpush1.msra.mxu0 0.0
    %1747 = vmatprep.subr.mxu0 0.0
    %1748 = vmatpush1.msra.mxu0 0.0
    %1749 = vmatprep.subr.mxu0 0.0
    %1750 = vmatpush1.msra.mxu0 0.0
    %1751 = vmatprep.subr.mxu0 0.0
    %1752 = vmatpush1.msra.mxu0 %v45
    %1753 = vmatprep.subr.mxu0 0.0
    %1754 = vmatpush2.msra.mxu0 0.0
    %1755 = vmatprep.subr.mxu0 0.0
    %1756 = vmatpush2.msra.mxu0 0.0
    %1757 = vmatprep.subr.mxu0 0.0
    %1758 = vmatpush2.msra.mxu0 0.0
    %1759 = vmatprep.subr.mxu0 0.0
    %1760 = vmatpush2.msra.mxu0 0.0
    %1761 = vmatprep.subr.mxu0 0.0
    %1762 = vmatpush2.msra.mxu0 0.0
    %1763 = vmatprep.subr.mxu0 0.0
    %1764 = vmatpush2.msra.mxu0 0.0
    %1765 = vmatprep.subr.mxu0 0.0
    %1766 = vmatpush2.msra.mxu0 0.0
    %1767 = vmatprep.subr.mxu0 0.0
    %1768 = vmatpush2.msra.mxu0 0.0
    %1769 = vmatprep.subr.mxu0 0.0
    %1770 = vmatpush2.msra.mxu0 0.0
    %1771 = vmatprep.subr.mxu0 0.0
    %1772 = vmatpush2.msra.mxu0 0.0
    %1773 = vmatprep.subr.mxu0 0.0
    %1774 = vmatpush2.msra.mxu0 0.0
    %1775 = vmatprep.subr.mxu0 0.0
    %1776 = vmatpush2.msra.mxu0 0.0
    %1777 = vmatprep.subr.mxu0 0.0
    %1778 = vmatpush2.msra.mxu0 0.0
    %1779 = vmatprep.subr.mxu0 0.0
    %1780 = vmatpush2.msra.mxu0 0.0
    %1781 = vmatprep.subr.mxu0 0.0
    %1782 = vmatpush2.msra.mxu0 0.0
    %1783 = vmatprep.subr.mxu0 0.0
    %1784 = vmatpush2.msra.mxu0 0.0
    %1785 = vmatprep.mubr.f32.mxu0 0.0
    %1786 = vmatmul.mubr.f32.gmra.mxu0 %v1719
    %v1787 = vpop.f32.mrf.mxu0
    %v1788 = vadd.f32 0.0, %v1787
    %v1789 = vpop.f32.mrf.mxu0
    %1790 = vdwg.mxu0
    %v1792 = vsel %vm324, %v1703, 0
    %1794 = vmatprep.subr.mxu0 0.0
    %1795 = vmatpush1.msra.mxu0 0.0
    %1796 = vmatprep.subr.mxu0 0.0
    %1797 = vmatpush1.msra.mxu0 0.0
    %1798 = vmatprep.subr.mxu0 0.0
    %1799 = vmatpush1.msra.mxu0 0.0
    %1800 = vmatprep.subr.mxu0 0.0
    %1801 = vmatpush1.msra.mxu0 0.0
    %1802 = vmatprep.subr.mxu0 0.0
    %1803 = vmatpush1.msra.mxu0 0.0
    %1804 = vmatprep.subr.mxu0 0.0
    %1805 = vmatpush1.msra.mxu0 0.0
    %1806 = vmatprep.subr.mxu0 0.0
    %1807 = vmatpush1.msra.mxu0 0.0
    %1808 = vmatprep.subr.mxu0 0.0
    %1809 = vmatpush1.msra.mxu0 0.0
    %1810 = vmatprep.subr.mxu0 0.0
    %1811 = vmatpush1.msra.mxu0 0.0
    %1812 = vmatprep.subr.mxu0 0.0
    %1813 = vmatpush1.msra.mxu0 0.0
    %1814 = vmatprep.subr.mxu0 0.0
    %1815 = vmatpush1.msra.mxu0 0.0
    %1816 = vmatprep.subr.mxu0 0.0
    %1817 = vmatpush1.msra.mxu0 0.0
    %1818 = vmatprep.subr.mxu0 0.0
    %1819 = vmatpush1.msra.mxu0 0.0
    %1820 = vmatprep.subr.mxu0 0.0
    %1821 = vmatpush1.msra.mxu0 0.0
    %1822 = vmatprep.subr.mxu0 0.0
    %1823 = vmatpush1.msra.mxu0 0.0
    %1824 = vmatprep.subr.mxu0 0.0
    %1825 = vmatpush1.msra.mxu0 %v46
    %1826 = vmatprep.subr.mxu0 0.0
    %1827 = vmatpush2.msra.mxu0 0.0
    %1828 = vmatprep.subr.mxu0 0.0
    %1829 = vmatpush2.msra.mxu0 0.0
    %1830 = vmatprep.subr.mxu0 0.0
    %1831 = vmatpush2.msra.mxu0 0.0
    %1832 = vmatprep.subr.mxu0 0.0
    %1833 = vmatpush2.msra.mxu0 0.0
    %1834 = vmatprep.subr.mxu0 0.0
    %1835 = vmatpush2.msra.mxu0 0.0
    %1836 = vmatprep.subr.mxu0 0.0
    %1837 = vmatpush2.msra.mxu0 0.0
    %1838 = vmatprep.subr.mxu0 0.0
    %1839 = vmatpush2.msra.mxu0 0.0
    %1840 = vmatprep.subr.mxu0 0.0
    %1841 = vmatpush2.msra.mxu0 0.0
    %1842 = vmatprep.subr.mxu0 0.0
    %1843 = vmatpush2.msra.mxu0 0.0
    %1844 = vmatprep.subr.mxu0 0.0
    %1845 = vmatpush2.msra.mxu0 0.0
    %1846 = vmatprep.subr.mxu0 0.0
    %1847 = vmatpush2.msra.mxu0 0.0
    %1848 = vmatprep.subr.mxu0 0.0
    %1849 = vmatpush2.msra.mxu0 0.0
    %1850 = vmatprep.subr.mxu0 0.0
    %1851 = vmatpush2.msra.mxu0 0.0
    %1852 = vmatprep.subr.mxu0 0.0
    %1853 = vmatpush2.msra.mxu0 0.0
    %1854 = vmatprep.subr.mxu0 0.0
    %1855 = vmatpush2.msra.mxu0 0.0
    %1856 = vmatprep.subr.mxu0 0.0
    %1857 = vmatpush2.msra.mxu0 0.0
    %1858 = vmatprep.mubr.f32.mxu0 0.0
    %1859 = vmatmul.mubr.f32.gmra.mxu0 %v1792
    %v1860 = vpop.f32.mrf.mxu0
    %v1861 = vadd.f32 0.0, %v1860
    %v1862 = vpop.f32.mrf.mxu0
    %1863 = vdwg.mxu0
    %v1865 = vsel %vm324, %v1704, 0
    %1867 = vmatprep.subr.mxu0 0.0
    %1868 = vmatpush1.msra.mxu0 0.0
    %1869 = vmatprep.subr.mxu0 0.0
    %1870 = vmatpush1.msra.mxu0 0.0
    %1871 = vmatprep.subr.mxu0 0.0
    %1872 = vmatpush1.msra.mxu0 0.0
    %1873 = vmatprep.subr.mxu0 0.0
    %1874 = vmatpush1.msra.mxu0 0.0
    %1875 = vmatprep.subr.mxu0 0.0
    %1876 = vmatpush1.msra.mxu0 0.0
    %1877 = vmatprep.subr.mxu0 0.0
    %1878 = vmatpush1.msra.mxu0 0.0
    %1879 = vmatprep.subr.mxu0 0.0
    %1880 = vmatpush1.msra.mxu0 0.0
    %1881 = vmatprep.subr.mxu0 0.0
    %1882 = vmatpush1.msra.mxu0 0.0
    %1883 = vmatprep.subr.mxu0 0.0
    %1884 = vmatpush1.msra.mxu0 0.0
    %1885 = vmatprep.subr.mxu0 0.0
    %1886 = vmatpush1.msra.mxu0 0.0
    %1887 = vmatprep.subr.mxu0 0.0
    %1888 = vmatpush1.msra.mxu0 0.0
    %1889 = vmatprep.subr.mxu0 0.0
    %1890 = vmatpush1.msra.mxu0 0.0
    %1891 = vmatprep.subr.mxu0 0.0
    %1892 = vmatpush1.msra.mxu0 0.0
    %1893 = vmatprep.subr.mxu0 0.0
    %1894 = vmatpush1.msra.mxu0 0.0
    %1895 = vmatprep.subr.mxu0 0.0
    %1896 = vmatpush1.msra.mxu0 0.0
    %1897 = vmatprep.subr.mxu0 0.0
    %1898 = vmatpush1.msra.mxu0 %v47
    %1899 = vmatprep.subr.mxu0 0.0
    %1900 = vmatpush2.msra.mxu0 0.0
    %1901 = vmatprep.subr.mxu0 0.0
    %1902 = vmatpush2.msra.mxu0 0.0
    %1903 = vmatprep.subr.mxu0 0.0
    %1904 = vmatpush2.msra.mxu0 0.0
    %1905 = vmatprep.subr.mxu0 0.0
    %1906 = vmatpush2.msra.mxu0 0.0
    %1907 = vmatprep.subr.mxu0 0.0
    %1908 = vmatpush2.msra.mxu0 0.0
    %1909 = vmatprep.subr.mxu0 0.0
    %1910 = vmatpush2.msra.mxu0 0.0
    %1911 = vmatprep.subr.mxu0 0.0
    %1912 = vmatpush2.msra.mxu0 0.0
    %1913 = vmatprep.subr.mxu0 0.0
    %1914 = vmatpush2.msra.mxu0 0.0
    %1915 = vmatprep.subr.mxu0 0.0
    %1916 = vmatpush2.msra.mxu0 0.0
    %1917 = vmatprep.subr.mxu0 0.0
    %1918 = vmatpush2.msra.mxu0 0.0
    %1919 = vmatprep.subr.mxu0 0.0
    %1920 = vmatpush2.msra.mxu0 0.0
    %1921 = vmatprep.subr.mxu0 0.0
    %1922 = vmatpush2.msra.mxu0 0.0
    %1923 = vmatprep.subr.mxu0 0.0
    %1924 = vmatpush2.msra.mxu0 0.0
    %1925 = vmatprep.subr.mxu0 0.0
    %1926 = vmatpush2.msra.mxu0 0.0
    %1927 = vmatprep.subr.mxu0 0.0
    %1928 = vmatpush2.msra.mxu0 0.0
    %1929 = vmatprep.subr.mxu0 0.0
    %1930 = vmatpush2.msra.mxu0 0.0
    %1931 = vmatprep.mubr.f32.mxu0 0.0
    %1932 = vmatmul.mubr.f32.gmra.mxu0 %v1865
    %v1933 = vpop.f32.mrf.mxu0
    %v1934 = vadd.f32 0.0, %v1933
    %v1935 = vpop.f32.mrf.mxu0
    %1936 = vdwg.mxu0
    %v1938 = vsel %vm324, %v1705, 0
    %1940 = vmatprep.subr.mxu0 0.0
    %1941 = vmatpush1.msra.mxu0 0.0
    %1942 = vmatprep.subr.mxu0 0.0
    %1943 = vmatpush1.msra.mxu0 0.0
    %1944 = vmatprep.subr.mxu0 0.0
    %1945 = vmatpush1.msra.mxu0 0.0
    %1946 = vmatprep.subr.mxu0 0.0
    %1947 = vmatpush1.msra.mxu0 0.0
    %1948 = vmatprep.subr.mxu0 0.0
    %1949 = vmatpush1.msra.mxu0 0.0
    %1950 = vmatprep.subr.mxu0 0.0
    %1951 = vmatpush1.msra.mxu0 0.0
    %1952 = vmatprep.subr.mxu0 0.0
    %1953 = vmatpush1.msra.mxu0 0.0
    %1954 = vmatprep.subr.mxu0 0.0
    %1955 = vmatpush1.msra.mxu0 0.0
    %1956 = vmatprep.subr.mxu0 0.0
    %1957 = vmatpush1.msra.mxu0 0.0
    %1958 = vmatprep.subr.mxu0 0.0
    %1959 = vmatpush1.msra.mxu0 0.0
    %1960 = vmatprep.subr.mxu0 0.0
    %1961 = vmatpush1.msra.mxu0 0.0
    %1962 = vmatprep.subr.mxu0 0.0
    %1963 = vmatpush1.msra.mxu0 0.0
    %1964 = vmatprep.subr.mxu0 0.0
    %1965 = vmatpush1.msra.mxu0 0.0
    %1966 = vmatprep.subr.mxu0 0.0
    %1967 = vmatpush1.msra.mxu0 0.0
    %1968 = vmatprep.subr.mxu0 0.0
    %1969 = vmatpush1.msra.mxu0 0.0
    %1970 = vmatprep.subr.mxu0 0.0
    %1971 = vmatpush1.msra.mxu0 %v48
    %1972 = vmatprep.subr.mxu0 0.0
    %1973 = vmatpush2.msra.mxu0 0.0
    %1974 = vmatprep.subr.mxu0 0.0
    %1975 = vmatpush2.msra.mxu0 0.0
    %1976 = vmatprep.subr.mxu0 0.0
    %1977 = vmatpush2.msra.mxu0 0.0
    %1978 = vmatprep.subr.mxu0 0.0
    %1979 = vmatpush2.msra.mxu0 0.0
    %1980 = vmatprep.subr.mxu0 0.0
    %1981 = vmatpush2.msra.mxu0 0.0
    %1982 = vmatprep.subr.mxu0 0.0
    %1983 = vmatpush2.msra.mxu0 0.0
    %1984 = vmatprep.subr.mxu0 0.0
    %1985 = vmatpush2.msra.mxu0 0.0
    %1986 = vmatprep.subr.mxu0 0.0
    %1987 = vmatpush2.msra.mxu0 0.0
    %1988 = vmatprep.subr.mxu0 0.0
    %1989 = vmatpush2.msra.mxu0 0.0
    %1990 = vmatprep.subr.mxu0 0.0
    %1991 = vmatpush2.msra.mxu0 0.0
    %1992 = vmatprep.subr.mxu0 0.0
    %1993 = vmatpush2.msra.mxu0 0.0
    %1994 = vmatprep.subr.mxu0 0.0
    %1995 = vmatpush2.msra.mxu0 0.0
    %1996 = vmatprep.subr.mxu0 0.0
    %1997 = vmatpush2.msra.mxu0 0.0
    %1998 = vmatprep.subr.mxu0 0.0
    %1999 = vmatpush2.msra.mxu0 0.0
    %2000 = vmatprep.subr.mxu0 0.0
    %2001 = vmatpush2.msra.mxu0 0.0
    %2002 = vmatprep.subr.mxu0 0.0
    %2003 = vmatpush2.msra.mxu0 0.0
    %2004 = vmatprep.mubr.f32.mxu0 0.0
    %2005 = vmatmul.mubr.f32.gmra.mxu0 %v1938
    %v2006 = vpop.f32.mrf.mxu0
    %v2007 = vadd.f32 0.0, %v2006
    %v2008 = vpop.f32.mrf.mxu0
    %2009 = vdwg.mxu0
    %v2011 = vsel %vm324, %v1706, 0
    %2013 = vmatprep.subr.mxu0 0.0
    %2014 = vmatpush1.msra.mxu0 0.0
    %2015 = vmatprep.subr.mxu0 0.0
    %2016 = vmatpush1.msra.mxu0 0.0
    %2017 = vmatprep.subr.mxu0 0.0
    %2018 = vmatpush1.msra.mxu0 0.0
    %2019 = vmatprep.subr.mxu0 0.0
    %2020 = vmatpush1.msra.mxu0 0.0
    %2021 = vmatprep.subr.mxu0 0.0
    %2022 = vmatpush1.msra.mxu0 0.0
    %2023 = vmatprep.subr.mxu0 0.0
    %2024 = vmatpush1.msra.mxu0 0.0
    %2025 = vmatprep.subr.mxu0 0.0
    %2026 = vmatpush1.msra.mxu0 0.0
    %2027 = vmatprep.subr.mxu0 0.0
    %2028 = vmatpush1.msra.mxu0 0.0
    %2029 = vmatprep.subr.mxu0 0.0
    %2030 = vmatpush1.msra.mxu0 0.0
    %2031 = vmatprep.subr.mxu0 0.0
    %2032 = vmatpush1.msra.mxu0 0.0
    %2033 = vmatprep.subr.mxu0 0.0
    %2034 = vmatpush1.msra.mxu0 0.0
    %2035 = vmatprep.subr.mxu0 0.0
    %2036 = vmatpush1.msra.mxu0 0.0
    %2037 = vmatprep.subr.mxu0 0.0
    %2038 = vmatpush1.msra.mxu0 0.0
    %2039 = vmatprep.subr.mxu0 0.0
    %2040 = vmatpush1.msra.mxu0 0.0
    %2041 = vmatprep.subr.mxu0 0.0
    %2042 = vmatpush1.msra.mxu0 0.0
    %2043 = vmatprep.subr.mxu0 0.0
    %2044 = vmatpush1.msra.mxu0 %v49
    %2045 = vmatprep.subr.mxu0 0.0
    %2046 = vmatpush2.msra.mxu0 0.0
    %2047 = vmatprep.subr.mxu0 0.0
    %2048 = vmatpush2.msra.mxu0 0.0
    %2049 = vmatprep.subr.mxu0 0.0
    %2050 = vmatpush2.msra.mxu0 0.0
    %2051 = vmatprep.subr.mxu0 0.0
    %2052 = vmatpush2.msra.mxu0 0.0
    %2053 = vmatprep.subr.mxu0 0.0
    %2054 = vmatpush2.msra.mxu0 0.0
    %2055 = vmatprep.subr.mxu0 0.0
    %2056 = vmatpush2.msra.mxu0 0.0
    %2057 = vmatprep.subr.mxu0 0.0
    %2058 = vmatpush2.msra.mxu0 0.0
    %2059 = vmatprep.subr.mxu0 0.0
    %2060 = vmatpush2.msra.mxu0 0.0
    %2061 = vmatprep.subr.mxu0 0.0
    %2062 = vmatpush2.msra.mxu0 0.0
    %2063 = vmatprep.subr.mxu0 0.0
    %2064 = vmatpush2.msra.mxu0 0.0
    %2065 = vmatprep.subr.mxu0 0.0
    %2066 = vmatpush2.msra.mxu0 0.0
    %2067 = vmatprep.subr.mxu0 0.0
    %2068 = vmatpush2.msra.mxu0 0.0
    %2069 = vmatprep.subr.mxu0 0.0
    %2070 = vmatpush2.msra.mxu0 0.0
    %2071 = vmatprep.subr.mxu0 0.0
    %2072 = vmatpush2.msra.mxu0 0.0
    %2073 = vmatprep.subr.mxu0 0.0
    %2074 = vmatpush2.msra.mxu0 0.0
    %2075 = vmatprep.subr.mxu0 0.0
    %2076 = vmatpush2.msra.mxu0 0.0
    %2077 = vmatprep.mubr.f32.mxu0 0.0
    %2078 = vmatmul.mubr.f32.gmra.mxu0 %v2011
    %v2079 = vpop.f32.mrf.mxu0
    %v2080 = vadd.f32 0.0, %v2079
    %v2081 = vpop.f32.mrf.mxu0
    %2082 = vdwg.mxu0
    %v2084 = vsel %vm324, %v1707, 0
    %2086 = vmatprep.subr.mxu0 0.0
    %2087 = vmatpush1.msra.mxu0 0.0
    %2088 = vmatprep.subr.mxu0 0.0
    %2089 = vmatpush1.msra.mxu0 0.0
    %2090 = vmatprep.subr.mxu0 0.0
    %2091 = vmatpush1.msra.mxu0 0.0
    %2092 = vmatprep.subr.mxu0 0.0
    %2093 = vmatpush1.msra.mxu0 0.0
    %2094 = vmatprep.subr.mxu0 0.0
    %2095 = vmatpush1.msra.mxu0 0.0
    %2096 = vmatprep.subr.mxu0 0.0
    %2097 = vmatpush1.msra.mxu0 0.0
    %2098 = vmatprep.subr.mxu0 0.0
    %2099 = vmatpush1.msra.mxu0 0.0
    %2100 = vmatprep.subr.mxu0 0.0
    %2101 = vmatpush1.msra.mxu0 0.0
    %2102 = vmatprep.subr.mxu0 0.0
    %2103 = vmatpush1.msra.mxu0 0.0
    %2104 = vmatprep.subr.mxu0 0.0
    %2105 = vmatpush1.msra.mxu0 0.0
    %2106 = vmatprep.subr.mxu0 0.0
    %2107 = vmatpush1.msra.mxu0 0.0
    %2108 = vmatprep.subr.mxu0 0.0
    %2109 = vmatpush1.msra.mxu0 0.0
    %2110 = vmatprep.subr.mxu0 0.0
    %2111 = vmatpush1.msra.mxu0 0.0
    %2112 = vmatprep.subr.mxu0 0.0
    %2113 = vmatpush1.msra.mxu0 0.0
    %2114 = vmatprep.subr.mxu0 0.0
    %2115 = vmatpush1.msra.mxu0 0.0
    %2116 = vmatprep.subr.mxu0 0.0
    %2117 = vmatpush1.msra.mxu0 %v50
    %2118 = vmatprep.subr.mxu0 0.0
    %2119 = vmatpush2.msra.mxu0 0.0
    %2120 = vmatprep.subr.mxu0 0.0
    %2121 = vmatpush2.msra.mxu0 0.0
    %2122 = vmatprep.subr.mxu0 0.0
    %2123 = vmatpush2.msra.mxu0 0.0
    %2124 = vmatprep.subr.mxu0 0.0
    %2125 = vmatpush2.msra.mxu0 0.0
    %2126 = vmatprep.subr.mxu0 0.0
    %2127 = vmatpush2.msra.mxu0 0.0
    %2128 = vmatprep.subr.mxu0 0.0
    %2129 = vmatpush2.msra.mxu0 0.0
    %2130 = vmatprep.subr.mxu0 0.0
    %2131 = vmatpush2.msra.mxu0 0.0
    %2132 = vmatprep.subr.mxu0 0.0
    %2133 = vmatpush2.msra.mxu0 0.0
    %2134 = vmatprep.subr.mxu0 0.0
    %2135 = vmatpush2.msra.mxu0 0.0
    %2136 = vmatprep.subr.mxu0 0.0
    %2137 = vmatpush2.msra.mxu0 0.0
    %2138 = vmatprep.subr.mxu0 0.0
    %2139 = vmatpush2.msra.mxu0 0.0
    %2140 = vmatprep.subr.mxu0 0.0
    %2141 = vmatpush2.msra.mxu0 0.0
    %2142 = vmatprep.subr.mxu0 0.0
    %2143 = vmatpush2.msra.mxu0 0.0
    %2144 = vmatprep.subr.mxu0 0.0
    %2145 = vmatpush2.msra.mxu0 0.0
    %2146 = vmatprep.subr.mxu0 0.0
    %2147 = vmatpush2.msra.mxu0 0.0
    %2148 = vmatprep.subr.mxu0 0.0
    %2149 = vmatpush2.msra.mxu0 0.0
    %2150 = vmatprep.mubr.f32.mxu0 0.0
    %2151 = vmatmul.mubr.f32.gmra.mxu0 %v2084
    %v2152 = vpop.f32.mrf.mxu0
    %v2153 = vadd.f32 0.0, %v2152
    %v2154 = vpop.f32.mrf.mxu0
    %2155 = vdwg.mxu0
    %v2157 = vsel %vm324, %v1708, 0
    %2159 = vmatprep.subr.mxu0 0.0
    %2160 = vmatpush1.msra.mxu0 0.0
    %2161 = vmatprep.subr.mxu0 0.0
    %2162 = vmatpush1.msra.mxu0 0.0
    %2163 = vmatprep.subr.mxu0 0.0
    %2164 = vmatpush1.msra.mxu0 0.0
    %2165 = vmatprep.subr.mxu0 0.0
    %2166 = vmatpush1.msra.mxu0 0.0
    %2167 = vmatprep.subr.mxu0 0.0
    %2168 = vmatpush1.msra.mxu0 0.0
    %2169 = vmatprep.subr.mxu0 0.0
    %2170 = vmatpush1.msra.mxu0 0.0
    %2171 = vmatprep.subr.mxu0 0.0
    %2172 = vmatpush1.msra.mxu0 0.0
    %2173 = vmatprep.subr.mxu0 0.0
    %2174 = vmatpush1.msra.mxu0 0.0
    %2175 = vmatprep.subr.mxu0 0.0
    %2176 = vmatpush1.msra.mxu0 0.0
    %2177 = vmatprep.subr.mxu0 0.0
    %2178 = vmatpush1.msra.mxu0 0.0
    %2179 = vmatprep.subr.mxu0 0.0
    %2180 = vmatpush1.msra.mxu0 0.0
    %2181 = vmatprep.subr.mxu0 0.0
    %2182 = vmatpush1.msra.mxu0 0.0
    %2183 = vmatprep.subr.mxu0 0.0
    %2184 = vmatpush1.msra.mxu0 0.0
    %2185 = vmatprep.subr.mxu0 0.0
    %2186 = vmatpush1.msra.mxu0 0.0
    %2187 = vmatprep.subr.mxu0 0.0
    %2188 = vmatpush1.msra.mxu0 0.0
    %2189 = vmatprep.subr.mxu0 0.0
    %2190 = vmatpush1.msra.mxu0 %v51
    %2191 = vmatprep.subr.mxu0 0.0
    %2192 = vmatpush2.msra.mxu0 0.0
    %2193 = vmatprep.subr.mxu0 0.0
    %2194 = vmatpush2.msra.mxu0 0.0
    %2195 = vmatprep.subr.mxu0 0.0
    %2196 = vmatpush2.msra.mxu0 0.0
    %2197 = vmatprep.subr.mxu0 0.0
    %2198 = vmatpush2.msra.mxu0 0.0
    %2199 = vmatprep.subr.mxu0 0.0
    %2200 = vmatpush2.msra.mxu0 0.0
    %2201 = vmatprep.subr.mxu0 0.0
    %2202 = vmatpush2.msra.mxu0 0.0
    %2203 = vmatprep.subr.mxu0 0.0
    %2204 = vmatpush2.msra.mxu0 0.0
    %2205 = vmatprep.subr.mxu0 0.0
    %2206 = vmatpush2.msra.mxu0 0.0
    %2207 = vmatprep.subr.mxu0 0.0
    %2208 = vmatpush2.msra.mxu0 0.0
    %2209 = vmatprep.subr.mxu0 0.0
    %2210 = vmatpush2.msra.mxu0 0.0
    %2211 = vmatprep.subr.mxu0 0.0
    %2212 = vmatpush2.msra.mxu0 0.0
    %2213 = vmatprep.subr.mxu0 0.0
    %2214 = vmatpush2.msra.mxu0 0.0
    %2215 = vmatprep.subr.mxu0 0.0
    %2216 = vmatpush2.msra.mxu0 0.0
    %2217 = vmatprep.subr.mxu0 0.0
    %2218 = vmatpush2.msra.mxu0 0.0
    %2219 = vmatprep.subr.mxu0 0.0
    %2220 = vmatpush2.msra.mxu0 0.0
    %2221 = vmatprep.subr.mxu0 0.0
    %2222 = vmatpush2.msra.mxu0 0.0
    %2223 = vmatprep.mubr.f32.mxu0 0.0
    %2224 = vmatmul.mubr.f32.gmra.mxu0 %v2157
    %v2225 = vpop.f32.mrf.mxu0
    %v2226 = vadd.f32 0.0, %v2225
    %v2227 = vpop.f32.mrf.mxu0
    %2228 = vdwg.mxu0
    %v2230 = vsel %vm324, %v1709, 0
    %2232 = vmatprep.subr.mxu0 0.0
    %2233 = vmatpush1.msra.mxu0 0.0
    %2234 = vmatprep.subr.mxu0 0.0
    %2235 = vmatpush1.msra.mxu0 0.0
    %2236 = vmatprep.subr.mxu0 0.0
    %2237 = vmatpush1.msra.mxu0 0.0
    %2238 = vmatprep.subr.mxu0 0.0
    %2239 = vmatpush1.msra.mxu0 0.0
    %2240 = vmatprep.subr.mxu0 0.0
    %2241 = vmatpush1.msra.mxu0 0.0
    %2242 = vmatprep.subr.mxu0 0.0
    %2243 = vmatpush1.msra.mxu0 0.0
    %2244 = vmatprep.subr.mxu0 0.0
    %2245 = vmatpush1.msra.mxu0 0.0
    %2246 = vmatprep.subr.mxu0 0.0
    %2247 = vmatpush1.msra.mxu0 0.0
    %2248 = vmatprep.subr.mxu0 0.0
    %2249 = vmatpush1.msra.mxu0 0.0
    %2250 = vmatprep.subr.mxu0 0.0
    %2251 = vmatpush1.msra.mxu0 0.0
    %2252 = vmatprep.subr.mxu0 0.0
    %2253 = vmatpush1.msra.mxu0 0.0
    %2254 = vmatprep.subr.mxu0 0.0
    %2255 = vmatpush1.msra.mxu0 0.0
    %2256 = vmatprep.subr.mxu0 0.0
    %2257 = vmatpush1.msra.mxu0 0.0
    %2258 = vmatprep.subr.mxu0 0.0
    %2259 = vmatpush1.msra.mxu0 0.0
    %2260 = vmatprep.subr.mxu0 0.0
    %2261 = vmatpush1.msra.mxu0 0.0
    %2262 = vmatprep.subr.mxu0 0.0
    %2263 = vmatpush1.msra.mxu0 %v52
    %2264 = vmatprep.subr.mxu0 0.0
    %2265 = vmatpush2.msra.mxu0 0.0
    %2266 = vmatprep.subr.mxu0 0.0
    %2267 = vmatpush2.msra.mxu0 0.0
    %2268 = vmatprep.subr.mxu0 0.0
    %2269 = vmatpush2.msra.mxu0 0.0
    %2270 = vmatprep.subr.mxu0 0.0
    %2271 = vmatpush2.msra.mxu0 0.0
    %2272 = vmatprep.subr.mxu0 0.0
    %2273 = vmatpush2.msra.mxu0 0.0
    %2274 = vmatprep.subr.mxu0 0.0
    %2275 = vmatpush2.msra.mxu0 0.0
    %2276 = vmatprep.subr.mxu0 0.0
    %2277 = vmatpush2.msra.mxu0 0.0
    %2278 = vmatprep.subr.mxu0 0.0
    %2279 = vmatpush2.msra.mxu0 0.0
    %2280 = vmatprep.subr.mxu0 0.0
    %2281 = vmatpush2.msra.mxu0 0.0
    %2282 = vmatprep.subr.mxu0 0.0
    %2283 = vmatpush2.msra.mxu0 0.0
    %2284 = vmatprep.subr.mxu0 0.0
    %2285 = vmatpush2.msra.mxu0 0.0
    %2286 = vmatprep.subr.mxu0 0.0
    %2287 = vmatpush2.msra.mxu0 0.0
    %2288 = vmatprep.subr.mxu0 0.0
    %2289 = vmatpush2.msra.mxu0 0.0
    %2290 = vmatprep.subr.mxu0 0.0
    %2291 = vmatpush2.msra.mxu0 0.0
    %2292 = vmatprep.subr.mxu0 0.0
    %2293 = vmatpush2.msra.mxu0 0.0
    %2294 = vmatprep.subr.mxu0 0.0
    %2295 = vmatpush2.msra.mxu0 0.0
    %2296 = vmatprep.mubr.f32.mxu0 0.0
    %2297 = vmatmul.mubr.f32.gmra.mxu0 %v2230
    %v2298 = vpop.f32.mrf.mxu0
    %v2299 = vadd.f32 0.0, %v2298
    %v2300 = vpop.f32.mrf.mxu0
    %2301 = vdwg.mxu0
    %v2303 = vsel %vm324, %v1710, 0
    %2305 = vmatprep.subr.mxu0 0.0
    %2306 = vmatpush1.msra.mxu0 0.0
    %2307 = vmatprep.subr.mxu0 0.0
    %2308 = vmatpush1.msra.mxu0 0.0
    %2309 = vmatprep.subr.mxu0 0.0
    %2310 = vmatpush1.msra.mxu0 0.0
    %2311 = vmatprep.subr.mxu0 0.0
    %2312 = vmatpush1.msra.mxu0 0.0
    %2313 = vmatprep.subr.mxu0 0.0
    %2314 = vmatpush1.msra.mxu0 0.0
    %2315 = vmatprep.subr.mxu0 0.0
    %2316 = vmatpush1.msra.mxu0 0.0
    %2317 = vmatprep.subr.mxu0 0.0
    %2318 = vmatpush1.msra.mxu0 0.0
    %2319 = vmatprep.subr.mxu0 0.0
    %2320 = vmatpush1.msra.mxu0 0.0
    %2321 = vmatprep.subr.mxu0 0.0
    %2322 = vmatpush1.msra.mxu0 0.0
    %2323 = vmatprep.subr.mxu0 0.0
    %2324 = vmatpush1.msra.mxu0 0.0
    %2325 = vmatprep.subr.mxu0 0.0
    %2326 = vmatpush1.msra.mxu0 0.0
    %2327 = vmatprep.subr.mxu0 0.0
    %2328 = vmatpush1.msra.mxu0 0.0
    %2329 = vmatprep.subr.mxu0 0.0
    %2330 = vmatpush1.msra.mxu0 0.0
    %2331 = vmatprep.subr.mxu0 0.0
    %2332 = vmatpush1.msra.mxu0 0.0
    %2333 = vmatprep.subr.mxu0 0.0
    %2334 = vmatpush1.msra.mxu0 0.0
    %2335 = vmatprep.subr.mxu0 0.0
    %2336 = vmatpush1.msra.mxu0 %v53
    %2337 = vmatprep.subr.mxu0 0.0
    %2338 = vmatpush2.msra.mxu0 0.0
    %2339 = vmatprep.subr.mxu0 0.0
    %2340 = vmatpush2.msra.mxu0 0.0
    %2341 = vmatprep.subr.mxu0 0.0
    %2342 = vmatpush2.msra.mxu0 0.0
    %2343 = vmatprep.subr.mxu0 0.0
    %2344 = vmatpush2.msra.mxu0 0.0
    %2345 = vmatprep.subr.mxu0 0.0
    %2346 = vmatpush2.msra.mxu0 0.0
    %2347 = vmatprep.subr.mxu0 0.0
    %2348 = vmatpush2.msra.mxu0 0.0
    %2349 = vmatprep.subr.mxu0 0.0
    %2350 = vmatpush2.msra.mxu0 0.0
    %2351 = vmatprep.subr.mxu0 0.0
    %2352 = vmatpush2.msra.mxu0 0.0
    %2353 = vmatprep.subr.mxu0 0.0
    %2354 = vmatpush2.msra.mxu0 0.0
    %2355 = vmatprep.subr.mxu0 0.0
    %2356 = vmatpush2.msra.mxu0 0.0
    %2357 = vmatprep.subr.mxu0 0.0
    %2358 = vmatpush2.msra.mxu0 0.0
    %2359 = vmatprep.subr.mxu0 0.0
    %2360 = vmatpush2.msra.mxu0 0.0
    %2361 = vmatprep.subr.mxu0 0.0
    %2362 = vmatpush2.msra.mxu0 0.0
    %2363 = vmatprep.subr.mxu0 0.0
    %2364 = vmatpush2.msra.mxu0 0.0
    %2365 = vmatprep.subr.mxu0 0.0
    %2366 = vmatpush2.msra.mxu0 0.0
    %2367 = vmatprep.subr.mxu0 0.0
    %2368 = vmatpush2.msra.mxu0 0.0
    %2369 = vmatprep.mubr.f32.mxu0 0.0
    %2370 = vmatmul.mubr.f32.gmra.mxu0 %v2303
    %v2371 = vpop.f32.mrf.mxu0
    %v2372 = vadd.f32 0.0, %v2371
    %v2373 = vpop.f32.mrf.mxu0
    %2374 = vdwg.mxu0
    %v2376 = vsel %vm324, %v1711, 0
    %2378 = vmatprep.subr.mxu0 0.0
    %2379 = vmatpush1.msra.mxu0 0.0
    %2380 = vmatprep.subr.mxu0 0.0
    %2381 = vmatpush1.msra.mxu0 0.0
    %2382 = vmatprep.subr.mxu0 0.0
    %2383 = vmatpush1.msra.mxu0 0.0
    %2384 = vmatprep.subr.mxu0 0.0
    %2385 = vmatpush1.msra.mxu0 0.0
    %2386 = vmatprep.subr.mxu0 0.0
    %2387 = vmatpush1.msra.mxu0 0.0
    %2388 = vmatprep.subr.mxu0 0.0
    %2389 = vmatpush1.msra.mxu0 0.0
    %2390 = vmatprep.subr.mxu0 0.0
    %2391 = vmatpush1.msra.mxu0 0.0
    %2392 = vmatprep.subr.mxu0 0.0
    %2393 = vmatpush1.msra.mxu0 0.0
    %2394 = vmatprep.subr.mxu0 0.0
    %2395 = vmatpush1.msra.mxu0 0.0
    %2396 = vmatprep.subr.mxu0 0.0
    %2397 = vmatpush1.msra.mxu0 0.0
    %2398 = vmatprep.subr.mxu0 0.0
    %2399 = vmatpush1.msra.mxu0 0.0
    %2400 = vmatprep.subr.mxu0 0.0
    %2401 = vmatpush1.msra.mxu0 0.0
    %2402 = vmatprep.subr.mxu0 0.0
    %2403 = vmatpush1.msra.mxu0 0.0
    %2404 = vmatprep.subr.mxu0 0.0
    %2405 = vmatpush1.msra.mxu0 0.0
    %2406 = vmatprep.subr.mxu0 0.0
    %2407 = vmatpush1.msra.mxu0 0.0
    %2408 = vmatprep.subr.mxu0 0.0
    %2409 = vmatpush1.msra.mxu0 %v54
    %2410 = vmatprep.subr.mxu0 0.0
    %2411 = vmatpush2.msra.mxu0 0.0
    %2412 = vmatprep.subr.mxu0 0.0
    %2413 = vmatpush2.msra.mxu0 0.0
    %2414 = vmatprep.subr.mxu0 0.0
    %2415 = vmatpush2.msra.mxu0 0.0
    %2416 = vmatprep.subr.mxu0 0.0
    %2417 = vmatpush2.msra.mxu0 0.0
    %2418 = vmatprep.subr.mxu0 0.0
    %2419 = vmatpush2.msra.mxu0 0.0
    %2420 = vmatprep.subr.mxu0 0.0
    %2421 = vmatpush2.msra.mxu0 0.0
    %2422 = vmatprep.subr.mxu0 0.0
    %2423 = vmatpush2.msra.mxu0 0.0
    %2424 = vmatprep.subr.mxu0 0.0
    %2425 = vmatpush2.msra.mxu0 0.0
    %2426 = vmatprep.subr.mxu0 0.0
    %2427 = vmatpush2.msra.mxu0 0.0
    %2428 = vmatprep.subr.mxu0 0.0
    %2429 = vmatpush2.msra.mxu0 0.0
    %2430 = vmatprep.subr.mxu0 0.0
    %2431 = vmatpush2.msra.mxu0 0.0
    %2432 = vmatprep.subr.mxu0 0.0
    %2433 = vmatpush2.msra.mxu0 0.0
    %2434 = vmatprep.subr.mxu0 0.0
    %2435 = vmatpush2.msra.mxu0 0.0
    %2436 = vmatprep.subr.mxu0 0.0
    %2437 = vmatpush2.msra.mxu0 0.0
    %2438 = vmatprep.subr.mxu0 0.0
    %2439 = vmatpush2.msra.mxu0 0.0
    %2440 = vmatprep.subr.mxu0 0.0
    %2441 = vmatpush2.msra.mxu0 0.0
    %2442 = vmatprep.mubr.f32.mxu0 0.0
    %2443 = vmatmul.mubr.f32.gmra.mxu0 %v2376
    %v2444 = vpop.f32.mrf.mxu0
    %v2445 = vadd.f32 0.0, %v2444
    %v2446 = vpop.f32.mrf.mxu0
    %2447 = vdwg.mxu0
    %v2449 = vsel %vm324, %v1712, 0
    %2451 = vmatprep.subr.mxu0 0.0
    %2452 = vmatpush1.msra.mxu0 0.0
    %2453 = vmatprep.subr.mxu0 0.0
    %2454 = vmatpush1.msra.mxu0 0.0
    %2455 = vmatprep.subr.mxu0 0.0
    %2456 = vmatpush1.msra.mxu0 0.0
    %2457 = vmatprep.subr.mxu0 0.0
    %2458 = vmatpush1.msra.mxu0 0.0
    %2459 = vmatprep.subr.mxu0 0.0
    %2460 = vmatpush1.msra.mxu0 0.0
    %2461 = vmatprep.subr.mxu0 0.0
    %2462 = vmatpush1.msra.mxu0 0.0
    %2463 = vmatprep.subr.mxu0 0.0
    %2464 = vmatpush1.msra.mxu0 0.0
    %2465 = vmatprep.subr.mxu0 0.0
    %2466 = vmatpush1.msra.mxu0 0.0
    %2467 = vmatprep.subr.mxu0 0.0
    %2468 = vmatpush1.msra.mxu0 0.0
    %2469 = vmatprep.subr.mxu0 0.0
    %2470 = vmatpush1.msra.mxu0 0.0
    %2471 = vmatprep.subr.mxu0 0.0
    %2472 = vmatpush1.msra.mxu0 0.0
    %2473 = vmatprep.subr.mxu0 0.0
    %2474 = vmatpush1.msra.mxu0 0.0
    %2475 = vmatprep.subr.mxu0 0.0
    %2476 = vmatpush1.msra.mxu0 0.0
    %2477 = vmatprep.subr.mxu0 0.0
    %2478 = vmatpush1.msra.mxu0 0.0
    %2479 = vmatprep.subr.mxu0 0.0
    %2480 = vmatpush1.msra.mxu0 0.0
    %2481 = vmatprep.subr.mxu0 0.0
    %2482 = vmatpush1.msra.mxu0 %v55
    %2483 = vmatprep.subr.mxu0 0.0
    %2484 = vmatpush2.msra.mxu0 0.0
    %2485 = vmatprep.subr.mxu0 0.0
    %2486 = vmatpush2.msra.mxu0 0.0
    %2487 = vmatprep.subr.mxu0 0.0
    %2488 = vmatpush2.msra.mxu0 0.0
    %2489 = vmatprep.subr.mxu0 0.0
    %2490 = vmatpush2.msra.mxu0 0.0
    %2491 = vmatprep.subr.mxu0 0.0
    %2492 = vmatpush2.msra.mxu0 0.0
    %2493 = vmatprep.subr.mxu0 0.0
    %2494 = vmatpush2.msra.mxu0 0.0
    %2495 = vmatprep.subr.mxu0 0.0
    %2496 = vmatpush2.msra.mxu0 0.0
    %2497 = vmatprep.subr.mxu0 0.0
    %2498 = vmatpush2.msra.mxu0 0.0
    %2499 = vmatprep.subr.mxu0 0.0
    %2500 = vmatpush2.msra.mxu0 0.0
    %2501 = vmatprep.subr.mxu0 0.0
    %2502 = vmatpush2.msra.mxu0 0.0
    %2503 = vmatprep.subr.mxu0 0.0
    %2504 = vmatpush2.msra.mxu0 0.0
    %2505 = vmatprep.subr.mxu0 0.0
    %2506 = vmatpush2.msra.mxu0 0.0
    %2507 = vmatprep.subr.mxu0 0.0
    %2508 = vmatpush2.msra.mxu0 0.0
    %2509 = vmatprep.subr.mxu0 0.0
    %2510 = vmatpush2.msra.mxu0 0.0
    %2511 = vmatprep.subr.mxu0 0.0
    %2512 = vmatpush2.msra.mxu0 0.0
    %2513 = vmatprep.subr.mxu0 0.0
    %2514 = vmatpush2.msra.mxu0 0.0
    %2515 = vmatprep.mubr.f32.mxu0 0.0
    %2516 = vmatmul.mubr.f32.gmra.mxu0 %v2449
    %v2517 = vpop.f32.mrf.mxu0
    %v2518 = vadd.f32 0.0, %v2517
    %v2519 = vpop.f32.mrf.mxu0
    %2520 = vdwg.mxu0
    %v2522 = vsel %vm324, %v1713, 0
    %2524 = vmatprep.subr.mxu0 0.0
    %2525 = vmatpush1.msra.mxu0 0.0
    %2526 = vmatprep.subr.mxu0 0.0
    %2527 = vmatpush1.msra.mxu0 0.0
    %2528 = vmatprep.subr.mxu0 0.0
    %2529 = vmatpush1.msra.mxu0 0.0
    %2530 = vmatprep.subr.mxu0 0.0
    %2531 = vmatpush1.msra.mxu0 0.0
    %2532 = vmatprep.subr.mxu0 0.0
    %2533 = vmatpush1.msra.mxu0 0.0
    %2534 = vmatprep.subr.mxu0 0.0
    %2535 = vmatpush1.msra.mxu0 0.0
    %2536 = vmatprep.subr.mxu0 0.0
    %2537 = vmatpush1.msra.mxu0 0.0
    %2538 = vmatprep.subr.mxu0 0.0
    %2539 = vmatpush1.msra.mxu0 0.0
    %2540 = vmatprep.subr.mxu0 0.0
    %2541 = vmatpush1.msra.mxu0 0.0
    %2542 = vmatprep.subr.mxu0 0.0
    %2543 = vmatpush1.msra.mxu0 0.0
    %2544 = vmatprep.subr.mxu0 0.0
    %2545 = vmatpush1.msra.mxu0 0.0
    %2546 = vmatprep.subr.mxu0 0.0
    %2547 = vmatpush1.msra.mxu0 0.0
    %2548 = vmatprep.subr.mxu0 0.0
    %2549 = vmatpush1.msra.mxu0 0.0
    %2550 = vmatprep.subr.mxu0 0.0
    %2551 = vmatpush1.msra.mxu0 0.0
    %2552 = vmatprep.subr.mxu0 0.0
    %2553 = vmatpush1.msra.mxu0 0.0
    %2554 = vmatprep.subr.mxu0 0.0
    %2555 = vmatpush1.msra.mxu0 %v56
    %2556 = vmatprep.subr.mxu0 0.0
    %2557 = vmatpush2.msra.mxu0 0.0
    %2558 = vmatprep.subr.mxu0 0.0
    %2559 = vmatpush2.msra.mxu0 0.0
    %2560 = vmatprep.subr.mxu0 0.0
    %2561 = vmatpush2.msra.mxu0 0.0
    %2562 = vmatprep.subr.mxu0 0.0
    %2563 = vmatpush2.msra.mxu0 0.0
    %2564 = vmatprep.subr.mxu0 0.0
    %2565 = vmatpush2.msra.mxu0 0.0
    %2566 = vmatprep.subr.mxu0 0.0
    %2567 = vmatpush2.msra.mxu0 0.0
    %2568 = vmatprep.subr.mxu0 0.0
    %2569 = vmatpush2.msra.mxu0 0.0
    %2570 = vmatprep.subr.mxu0 0.0
    %2571 = vmatpush2.msra.mxu0 0.0
    %2572 = vmatprep.subr.mxu0 0.0
    %2573 = vmatpush2.msra.mxu0 0.0
    %2574 = vmatprep.subr.mxu0 0.0
    %2575 = vmatpush2.msra.mxu0 0.0
    %2576 = vmatprep.subr.mxu0 0.0
    %2577 = vmatpush2.msra.mxu0 0.0
    %2578 = vmatprep.subr.mxu0 0.0
    %2579 = vmatpush2.msra.mxu0 0.0
    %2580 = vmatprep.subr.mxu0 0.0
    %2581 = vmatpush2.msra.mxu0 0.0
    %2582 = vmatprep.subr.mxu0 0.0
    %2583 = vmatpush2.msra.mxu0 0.0
    %2584 = vmatprep.subr.mxu0 0.0
    %2585 = vmatpush2.msra.mxu0 0.0
    %2586 = vmatprep.subr.mxu0 0.0
    %2587 = vmatpush2.msra.mxu0 0.0
    %2588 = vmatprep.mubr.f32.mxu0 0.0
    %2589 = vmatmul.mubr.f32.gmra.mxu0 %v2522
    %v2590 = vpop.f32.mrf.mxu0
    %v2591 = vadd.f32 0.0, %v2590
    %v2592 = vpop.f32.mrf.mxu0
    %2593 = vdwg.mxu0
    %v2595 = vsel %vm324, %v1714, 0
    %2597 = vmatprep.subr.mxu0 0.0
    %2598 = vmatpush1.msra.mxu0 0.0
    %2599 = vmatprep.subr.mxu0 0.0
    %2600 = vmatpush1.msra.mxu0 0.0
    %2601 = vmatprep.subr.mxu0 0.0
    %2602 = vmatpush1.msra.mxu0 0.0
    %2603 = vmatprep.subr.mxu0 0.0
    %2604 = vmatpush1.msra.mxu0 0.0
    %2605 = vmatprep.subr.mxu0 0.0
    %2606 = vmatpush1.msra.mxu0 0.0
    %2607 = vmatprep.subr.mxu0 0.0
    %2608 = vmatpush1.msra.mxu0 0.0
    %2609 = vmatprep.subr.mxu0 0.0
    %2610 = vmatpush1.msra.mxu0 0.0
    %2611 = vmatprep.subr.mxu0 0.0
    %2612 = vmatpush1.msra.mxu0 0.0
    %2613 = vmatprep.subr.mxu0 0.0
    %2614 = vmatpush1.msra.mxu0 0.0
    %2615 = vmatprep.subr.mxu0 0.0
    %2616 = vmatpush1.msra.mxu0 0.0
    %2617 = vmatprep.subr.mxu0 0.0
    %2618 = vmatpush1.msra.mxu0 0.0
    %2619 = vmatprep.subr.mxu0 0.0
    %2620 = vmatpush1.msra.mxu0 0.0
    %2621 = vmatprep.subr.mxu0 0.0
    %2622 = vmatpush1.msra.mxu0 0.0
    %2623 = vmatprep.subr.mxu0 0.0
    %2624 = vmatpush1.msra.mxu0 0.0
    %2625 = vmatprep.subr.mxu0 0.0
    %2626 = vmatpush1.msra.mxu0 0.0
    %2627 = vmatprep.subr.mxu0 0.0
    %2628 = vmatpush1.msra.mxu0 %v57
    %2629 = vmatprep.subr.mxu0 0.0
    %2630 = vmatpush2.msra.mxu0 0.0
    %2631 = vmatprep.subr.mxu0 0.0
    %2632 = vmatpush2.msra.mxu0 0.0
    %2633 = vmatprep.subr.mxu0 0.0
    %2634 = vmatpush2.msra.mxu0 0.0
    %2635 = vmatprep.subr.mxu0 0.0
    %2636 = vmatpush2.msra.mxu0 0.0
    %2637 = vmatprep.subr.mxu0 0.0
    %2638 = vmatpush2.msra.mxu0 0.0
    %2639 = vmatprep.subr.mxu0 0.0
    %2640 = vmatpush2.msra.mxu0 0.0
    %2641 = vmatprep.subr.mxu0 0.0
    %2642 = vmatpush2.msra.mxu0 0.0
    %2643 = vmatprep.subr.mxu0 0.0
    %2644 = vmatpush2.msra.mxu0 0.0
    %2645 = vmatprep.subr.mxu0 0.0
    %2646 = vmatpush2.msra.mxu0 0.0
    %2647 = vmatprep.subr.mxu0 0.0
    %2648 = vmatpush2.msra.mxu0 0.0
    %2649 = vmatprep.subr.mxu0 0.0
    %2650 = vmatpush2.msra.mxu0 0.0
    %2651 = vmatprep.subr.mxu0 0.0
    %2652 = vmatpush2.msra.mxu0 0.0
    %2653 = vmatprep.subr.mxu0 0.0
    %2654 = vmatpush2.msra.mxu0 0.0
    %2655 = vmatprep.subr.mxu0 0.0
    %2656 = vmatpush2.msra.mxu0 0.0
    %2657 = vmatprep.subr.mxu0 0.0
    %2658 = vmatpush2.msra.mxu0 0.0
    %2659 = vmatprep.subr.mxu0 0.0
    %2660 = vmatpush2.msra.mxu0 0.0
    %2661 = vmatprep.mubr.f32.mxu0 0.0
    %2662 = vmatmul.mubr.f32.gmra.mxu0 %v2595
    %v2663 = vpop.f32.mrf.mxu0
    %v2664 = vadd.f32 0.0, %v2663
    %v2665 = vpop.f32.mrf.mxu0
    %2666 = vdwg.mxu0
    %v2668 = vsel %vm324, %v1715, 0
    %2670 = vmatprep.subr.mxu0 0.0
    %2671 = vmatpush1.msra.mxu0 0.0
    %2672 = vmatprep.subr.mxu0 0.0
    %2673 = vmatpush1.msra.mxu0 0.0
    %2674 = vmatprep.subr.mxu0 0.0
    %2675 = vmatpush1.msra.mxu0 0.0
    %2676 = vmatprep.subr.mxu0 0.0
    %2677 = vmatpush1.msra.mxu0 0.0
    %2678 = vmatprep.subr.mxu0 0.0
    %2679 = vmatpush1.msra.mxu0 0.0
    %2680 = vmatprep.subr.mxu0 0.0
    %2681 = vmatpush1.msra.mxu0 0.0
    %2682 = vmatprep.subr.mxu0 0.0
    %2683 = vmatpush1.msra.mxu0 0.0
    %2684 = vmatprep.subr.mxu0 0.0
    %2685 = vmatpush1.msra.mxu0 0.0
    %2686 = vmatprep.subr.mxu0 0.0
    %2687 = vmatpush1.msra.mxu0 0.0
    %2688 = vmatprep.subr.mxu0 0.0
    %2689 = vmatpush1.msra.mxu0 0.0
    %2690 = vmatprep.subr.mxu0 0.0
    %2691 = vmatpush1.msra.mxu0 0.0
    %2692 = vmatprep.subr.mxu0 0.0
    %2693 = vmatpush1.msra.mxu0 0.0
    %2694 = vmatprep.subr.mxu0 0.0
    %2695 = vmatpush1.msra.mxu0 0.0
    %2696 = vmatprep.subr.mxu0 0.0
    %2697 = vmatpush1.msra.mxu0 0.0
    %2698 = vmatprep.subr.mxu0 0.0
    %2699 = vmatpush1.msra.mxu0 0.0
    %2700 = vmatprep.subr.mxu0 0.0
    %2701 = vmatpush1.msra.mxu0 %v58
    %2702 = vmatprep.subr.mxu0 0.0
    %2703 = vmatpush2.msra.mxu0 0.0
    %2704 = vmatprep.subr.mxu0 0.0
    %2705 = vmatpush2.msra.mxu0 0.0
    %2706 = vmatprep.subr.mxu0 0.0
    %2707 = vmatpush2.msra.mxu0 0.0
    %2708 = vmatprep.subr.mxu0 0.0
    %2709 = vmatpush2.msra.mxu0 0.0
    %2710 = vmatprep.subr.mxu0 0.0
    %2711 = vmatpush2.msra.mxu0 0.0
    %2712 = vmatprep.subr.mxu0 0.0
    %2713 = vmatpush2.msra.mxu0 0.0
    %2714 = vmatprep.subr.mxu0 0.0
    %2715 = vmatpush2.msra.mxu0 0.0
    %2716 = vmatprep.subr.mxu0 0.0
    %2717 = vmatpush2.msra.mxu0 0.0
    %2718 = vmatprep.subr.mxu0 0.0
    %2719 = vmatpush2.msra.mxu0 0.0
    %2720 = vmatprep.subr.mxu0 0.0
    %2721 = vmatpush2.msra.mxu0 0.0
    %2722 = vmatprep.subr.mxu0 0.0
    %2723 = vmatpush2.msra.mxu0 0.0
    %2724 = vmatprep.subr.mxu0 0.0
    %2725 = vmatpush2.msra.mxu0 0.0
    %2726 = vmatprep.subr.mxu0 0.0
    %2727 = vmatpush2.msra.mxu0 0.0
    %2728 = vmatprep.subr.mxu0 0.0
    %2729 = vmatpush2.msra.mxu0 0.0
    %2730 = vmatprep.subr.mxu0 0.0
    %2731 = vmatpush2.msra.mxu0 0.0
    %2732 = vmatprep.subr.mxu0 0.0
    %2733 = vmatpush2.msra.mxu0 0.0
    %2734 = vmatprep.mubr.f32.mxu0 0.0
    %2735 = vmatmul.mubr.f32.gmra.mxu0 %v2668
    %v2736 = vpop.f32.mrf.mxu0
    %v2737 = vadd.f32 0.0, %v2736
    %v2738 = vpop.f32.mrf.mxu0
    %2739 = vdwg.mxu0
    %v2741 = vsel %vm324, %v1716, 0
    %2743 = vmatprep.subr.mxu0 0.0
    %2744 = vmatpush1.msra.mxu0 0.0
    %2745 = vmatprep.subr.mxu0 0.0
    %2746 = vmatpush1.msra.mxu0 0.0
    %2747 = vmatprep.subr.mxu0 0.0
    %2748 = vmatpush1.msra.mxu0 0.0
    %2749 = vmatprep.subr.mxu0 0.0
    %2750 = vmatpush1.msra.mxu0 0.0
    %2751 = vmatprep.subr.mxu0 0.0
    %2752 = vmatpush1.msra.mxu0 0.0
    %2753 = vmatprep.subr.mxu0 0.0
    %2754 = vmatpush1.msra.mxu0 0.0
    %2755 = vmatprep.subr.mxu0 0.0
    %2756 = vmatpush1.msra.mxu0 0.0
    %2757 = vmatprep.subr.mxu0 0.0
    %2758 = vmatpush1.msra.mxu0 0.0
    %2759 = vmatprep.subr.mxu0 0.0
    %2760 = vmatpush1.msra.mxu0 0.0
    %2761 = vmatprep.subr.mxu0 0.0
    %2762 = vmatpush1.msra.mxu0 0.0
    %2763 = vmatprep.subr.mxu0 0.0
    %2764 = vmatpush1.msra.mxu0 0.0
    %2765 = vmatprep.subr.mxu0 0.0
    %2766 = vmatpush1.msra.mxu0 0.0
    %2767 = vmatprep.subr.mxu0 0.0
    %2768 = vmatpush1.msra.mxu0 0.0
    %2769 = vmatprep.subr.mxu0 0.0
    %2770 = vmatpush1.msra.mxu0 0.0
    %2771 = vmatprep.subr.mxu0 0.0
    %2772 = vmatpush1.msra.mxu0 0.0
    %2773 = vmatprep.subr.mxu0 0.0
    %2774 = vmatpush1.msra.mxu0 %v59
    %2775 = vmatprep.subr.mxu0 0.0
    %2776 = vmatpush2.msra.mxu0 0.0
    %2777 = vmatprep.subr.mxu0 0.0
    %2778 = vmatpush2.msra.mxu0 0.0
    %2779 = vmatprep.subr.mxu0 0.0
    %2780 = vmatpush2.msra.mxu0 0.0
    %2781 = vmatprep.subr.mxu0 0.0
    %2782 = vmatpush2.msra.mxu0 0.0
    %2783 = vmatprep.subr.mxu0 0.0
    %2784 = vmatpush2.msra.mxu0 0.0
    %2785 = vmatprep.subr.mxu0 0.0
    %2786 = vmatpush2.msra.mxu0 0.0
    %2787 = vmatprep.subr.mxu0 0.0
    %2788 = vmatpush2.msra.mxu0 0.0
    %2789 = vmatprep.subr.mxu0 0.0
    %2790 = vmatpush2.msra.mxu0 0.0
    %2791 = vmatprep.subr.mxu0 0.0
    %2792 = vmatpush2.msra.mxu0 0.0
    %2793 = vmatprep.subr.mxu0 0.0
    %2794 = vmatpush2.msra.mxu0 0.0
    %2795 = vmatprep.subr.mxu0 0.0
    %2796 = vmatpush2.msra.mxu0 0.0
    %2797 = vmatprep.subr.mxu0 0.0
    %2798 = vmatpush2.msra.mxu0 0.0
    %2799 = vmatprep.subr.mxu0 0.0
    %2800 = vmatpush2.msra.mxu0 0.0
    %2801 = vmatprep.subr.mxu0 0.0
    %2802 = vmatpush2.msra.mxu0 0.0
    %2803 = vmatprep.subr.mxu0 0.0
    %2804 = vmatpush2.msra.mxu0 0.0
    %2805 = vmatprep.subr.mxu0 0.0
    %2806 = vmatpush2.msra.mxu0 0.0
    %2807 = vmatprep.mubr.f32.mxu0 0.0
    %2808 = vmatmul.mubr.f32.gmra.mxu0 %v2741
    %v2809 = vpop.f32.mrf.mxu0
    %v2810 = vadd.f32 0.0, %v2809
    %v2811 = vpop.f32.mrf.mxu0
    %2812 = vdwg.mxu0
    %v2814 = vsel %vm324, %v1717, 0
    %2816 = vmatprep.subr.mxu0 0.0
    %2817 = vmatpush1.msra.mxu0 0.0
    %2818 = vmatprep.subr.mxu0 0.0
    %2819 = vmatpush1.msra.mxu0 0.0
    %2820 = vmatprep.subr.mxu0 0.0
    %2821 = vmatpush1.msra.mxu0 0.0
    %2822 = vmatprep.subr.mxu0 0.0
    %2823 = vmatpush1.msra.mxu0 0.0
    %2824 = vmatprep.subr.mxu0 0.0
    %2825 = vmatpush1.msra.mxu0 0.0
    %2826 = vmatprep.subr.mxu0 0.0
    %2827 = vmatpush1.msra.mxu0 0.0
    %2828 = vmatprep.subr.mxu0 0.0
    %2829 = vmatpush1.msra.mxu0 0.0
    %2830 = vmatprep.subr.mxu0 0.0
    %2831 = vmatpush1.msra.mxu0 0.0
    %2832 = vmatprep.subr.mxu0 0.0
    %2833 = vmatpush1.msra.mxu0 0.0
    %2834 = vmatprep.subr.mxu0 0.0
    %2835 = vmatpush1.msra.mxu0 0.0
    %2836 = vmatprep.subr.mxu0 0.0
    %2837 = vmatpush1.msra.mxu0 0.0
    %2838 = vmatprep.subr.mxu0 0.0
    %2839 = vmatpush1.msra.mxu0 0.0
    %2840 = vmatprep.subr.mxu0 0.0
    %2841 = vmatpush1.msra.mxu0 0.0
    %2842 = vmatprep.subr.mxu0 0.0
    %2843 = vmatpush1.msra.mxu0 0.0
    %2844 = vmatprep.subr.mxu0 0.0
    %2845 = vmatpush1.msra.mxu0 0.0
    %2846 = vmatprep.subr.mxu0 0.0
    %2847 = vmatpush1.msra.mxu0 %v60
    %2848 = vmatprep.subr.mxu0 0.0
    %2849 = vmatpush2.msra.mxu0 0.0
    %2850 = vmatprep.subr.mxu0 0.0
    %2851 = vmatpush2.msra.mxu0 0.0
    %2852 = vmatprep.subr.mxu0 0.0
    %2853 = vmatpush2.msra.mxu0 0.0
    %2854 = vmatprep.subr.mxu0 0.0
    %2855 = vmatpush2.msra.mxu0 0.0
    %2856 = vmatprep.subr.mxu0 0.0
    %2857 = vmatpush2.msra.mxu0 0.0
    %2858 = vmatprep.subr.mxu0 0.0
    %2859 = vmatpush2.msra.mxu0 0.0
    %2860 = vmatprep.subr.mxu0 0.0
    %2861 = vmatpush2.msra.mxu0 0.0
    %2862 = vmatprep.subr.mxu0 0.0
    %2863 = vmatpush2.msra.mxu0 0.0
    %2864 = vmatprep.subr.mxu0 0.0
    %2865 = vmatpush2.msra.mxu0 0.0
    %2866 = vmatprep.subr.mxu0 0.0
    %2867 = vmatpush2.msra.mxu0 0.0
    %2868 = vmatprep.subr.mxu0 0.0
    %2869 = vmatpush2.msra.mxu0 0.0
    %2870 = vmatprep.subr.mxu0 0.0
    %2871 = vmatpush2.msra.mxu0 0.0
    %2872 = vmatprep.subr.mxu0 0.0
    %2873 = vmatpush2.msra.mxu0 0.0
    %2874 = vmatprep.subr.mxu0 0.0
    %2875 = vmatpush2.msra.mxu0 0.0
    %2876 = vmatprep.subr.mxu0 0.0
    %2877 = vmatpush2.msra.mxu0 0.0
    %2878 = vmatprep.subr.mxu0 0.0
    %2879 = vmatpush2.msra.mxu0 0.0
    %2880 = vmatprep.mubr.f32.mxu0 0.0
    %2881 = vmatmul.mubr.f32.gmra.mxu0 %v2814
    %v2882 = vpop.f32.mrf.mxu0
    %v2883 = vadd.f32 0.0, %v2882
    %v2884 = vpop.f32.mrf.mxu0
    %2885 = vdwg.mxu0
    %v2886 = vcombine.low %v1788, %v1934
    %v2888 = vunpack.c.l.s4 1983009808
    %v2889 = vunpack.c.0.s8 %v2888
    %v2890 = vlaneseq
    %v2891 = vshrl.u32 %v2890, 7
    %v2892 = vsub.s32 %v2889, %v2891
    %v2893 = vrot.slane %v2886, %v2892
    %v2894 = vcombine.low %v1861, %v2007
    %v2896 = vunpack.c.l.s4 1983009808
    %v2897 = vunpack.c.0.s8 %v2896
    %v2898 = vlaneseq
    %v2899 = vshrl.u32 %v2898, 7
    %v2900 = vsub.s32 %v2897, %v2899
    %v2901 = vrot.slane %v2894, %v2900
    %v2902 = vcombine.low %v2080, %v2226
    %v2904 = vunpack.c.l.s4 1983009808
    %v2905 = vunpack.c.0.s8 %v2904
    %v2906 = vlaneseq
    %v2907 = vshrl.u32 %v2906, 7
    %v2908 = vsub.s32 %v2905, %v2907
    %v2909 = vrot.slane %v2902, %v2908
    %v2910 = vcombine.low %v2153, %v2299
    %v2912 = vunpack.c.l.s4 1983009808
    %v2913 = vunpack.c.0.s8 %v2912
    %v2914 = vlaneseq
    %v2915 = vshrl.u32 %v2914, 7
    %v2916 = vsub.s32 %v2913, %v2915
    %v2917 = vrot.slane %v2910, %v2916
    %v2918 = vcombine.low %v2893, %v2901
    %v2919 = vcombine.high %v2893, %v2901
    %v2921 = vunpack.c.l.s4 1934713408
    %v2922 = vunpack.c.0.s8 %v2921
    %v2923 = vlaneseq
    %v2924 = vshrl.u32 %v2923, 7
    %v2925 = vsub.s32 %v2922, %v2924
    %v2926 = vrot.slane %v2918, %v2925
    %v2928 = vunpack.c.l.s4 1934713408
    %v2929 = vunpack.c.0.s8 %v2928
    %v2930 = vlaneseq
    %v2931 = vshrl.u32 %v2930, 7
    %v2932 = vsub.s32 %v2929, %v2931
    %v2933 = vrot.slane %v2919, %v2932
    %v2934 = vcombine.low %v2909, %v2917
    %v2935 = vcombine.high %v2909, %v2917
    %v2937 = vunpack.c.l.s4 1934713408
    %v2938 = vunpack.c.0.s8 %v2937
    %v2939 = vlaneseq
    %v2940 = vshrl.u32 %v2939, 7
    %v2941 = vsub.s32 %v2938, %v2940
    %v2942 = vrot.slane %v2934, %v2941
    %v2944 = vunpack.c.l.s4 1934713408
    %v2945 = vunpack.c.0.s8 %v2944
    %v2946 = vlaneseq
    %v2947 = vshrl.u32 %v2946, 7
    %v2948 = vsub.s32 %v2945, %v2947
    %v2949 = vrot.slane %v2935, %v2948
    %v2950 = vcombine.low %v2926, %v2942
    %v2951 = vcombine.high %v2926, %v2942
    %v2952 = vcombine.low %v2933, %v2949
    %v2953 = vcombine.high %v2933, %v2949
    %v2954 = vcombine.low %v2372, %v2518
    %v2956 = vunpack.c.l.s4 1983009808
    %v2957 = vunpack.c.0.s8 %v2956
    %v2958 = vlaneseq
    %v2959 = vshrl.u32 %v2958, 7
    %v2960 = vsub.s32 %v2957, %v2959
    %v2961 = vrot.slane %v2954, %v2960
    %v2962 = vcombine.low %v2445, %v2591
    %v2964 = vunpack.c.l.s4 1983009808
    %v2965 = vunpack.c.0.s8 %v2964
    %v2966 = vlaneseq
    %v2967 = vshrl.u32 %v2966, 7
    %v2968 = vsub.s32 %v2965, %v2967
    %v2969 = vrot.slane %v2962, %v2968
    %v2970 = vcombine.low %v2664, %v2810
    %v2972 = vunpack.c.l.s4 1983009808
    %v2973 = vunpack.c.0.s8 %v2972
    %v2974 = vlaneseq
    %v2975 = vshrl.u32 %v2974, 7
    %v2976 = vsub.s32 %v2973, %v2975
    %v2977 = vrot.slane %v2970, %v2976
    %v2978 = vcombine.low %v2737, %v2883
    %v2980 = vunpack.c.l.s4 1983009808
    %v2981 = vunpack.c.0.s8 %v2980
    %v2982 = vlaneseq
    %v2983 = vshrl.u32 %v2982, 7
    %v2984 = vsub.s32 %v2981, %v2983
    %v2985 = vrot.slane %v2978, %v2984
    %v2986 = vcombine.low %v2961, %v2969
    %v2987 = vcombine.high %v2961, %v2969
    %v2989 = vunpack.c.l.s4 1934713408
    %v2990 = vunpack.c.0.s8 %v2989
    %v2991 = vlaneseq
    %v2992 = vshrl.u32 %v2991, 7
    %v2993 = vsub.s32 %v2990, %v2992
    %v2994 = vrot.slane %v2986, %v2993
    %v2996 = vunpack.c.l.s4 1934713408
    %v2997 = vunpack.c.0.s8 %v2996
    %v2998 = vlaneseq
    %v2999 = vshrl.u32 %v2998, 7
    %v3000 = vsub.s32 %v2997, %v2999
    %v3001 = vrot.slane %v2987, %v3000
    %v3002 = vcombine.low %v2977, %v2985
    %v3003 = vcombine.high %v2977, %v2985
    %v3005 = vunpack.c.l.s4 1934713408
    %v3006 = vunpack.c.0.s8 %v3005
    %v3007 = vlaneseq
    %v3008 = vshrl.u32 %v3007, 7
    %v3009 = vsub.s32 %v3006, %v3008
    %v3010 = vrot.slane %v3002, %v3009
    %v3012 = vunpack.c.l.s4 1934713408
    %v3013 = vunpack.c.0.s8 %v3012
    %v3014 = vlaneseq
    %v3015 = vshrl.u32 %v3014, 7
    %v3016 = vsub.s32 %v3013, %v3015
    %v3017 = vrot.slane %v3003, %v3016
    %v3018 = vcombine.low %v2994, %v3010
    %v3019 = vcombine.high %v2994, %v3010
    %v3020 = vcombine.low %v3001, %v3017
    %v3021 = vcombine.high %v3001, %v3017
    %3024 = vrot.lane.b32.xlu0 %v2951, 8
    %v3025 = vpop.permute.xlu0 %3024
    %3026 = vrot.lane.b32.xlu0 %v3019, 8
    %v3027 = vpop.permute.xlu0 %3026
    %3032 = vrot.lane.b32.xlu0 %v2952, 16
    %v3033 = vpop.permute.xlu0 %3032
    %3034 = vrot.lane.b32.xlu0 %v3020, 16
    %v3035 = vpop.permute.xlu0 %3034
    %3040 = vrot.lane.b32.xlu0 %v2953, 24
    %v3041 = vpop.permute.xlu0 %3040
    %3042 = vrot.lane.b32.xlu0 %v3021, 24
    %v3043 = vpop.permute.xlu0 %3042
    %v3046 = vsel %vm324, %v2950, %v3025
    %v3047 = vsel %vm324, %v3018, %v3027
    %vm3048 = vcmask 130048
    %v3049 = vsel %vm3048, %v3046, %v3033
    %v3050 = vsel %vm3048, %v3047, %v3035
    %vm3051 = vcmask 195584
    %v3052 = vsel %vm3051, %v3049, %v3041
    %v3053 = vsel %vm3051, %v3050, %v3043
    %v3054 = vld [vmem:[%s5] sm:$0xff]
    %v3055 = vld [vmem:[%s5 + $0x8] sm:$0xff]
    %v3056 = vld [vmem:[%s5 + $0x10] sm:$0xff]
    %v3057 = vld [vmem:[%s5 + $0x18] sm:$0xff]
    %v3058 = vld [vmem:[%s5 + $0x20] sm:$0xff]
    %v3059 = vld [vmem:[%s5 + $0x28] sm:$0xff]
    %v3060 = vld [vmem:[%s5 + $0x30] sm:$0xff]
    %v3061 = vld [vmem:[%s5 + $0x38] sm:$0xff]
    %v3062 = vld [vmem:[%s5 + $0x40] sm:$0xff]
    %v3063 = vld [vmem:[%s5 + $0x48] sm:$0xff]
    %v3064 = vld [vmem:[%s5 + $0x50] sm:$0xff]
    %v3065 = vld [vmem:[%s5 + $0x58] sm:$0xff]
    %v3066 = vld [vmem:[%s5 + $0x60] sm:$0xff]
    %v3067 = vld [vmem:[%s5 + $0x68] sm:$0xff]
    %v3068 = vld [vmem:[%s5 + $0x70] sm:$0xff]
    %v3069 = vld [vmem:[%s5 + $0x78] sm:$0xff]
    %v3070 = vld [vmem:[%s6] sm:$0x1]
    %v3072 = vlaneseq
    %v3073 = vshrl.u32 %v3072, 7
    %v3074 = vsub.s32 0, %v3073
    %v3075 = vrot.slane %v3070, %v3074
    %v3078 = vsel %vm72, %v3052, 0
    %v3081 = vsel %vm72, %v3053, 0
    %v3084 = vsel %vm72, %v3054, 0
    %v3087 = vsel %vm72, %v3055, 0
    %v3090 = vsel %vm72, %v3056, 0
    %v3093 = vsel %vm72, %v3057, 0
    %v3096 = vsel %vm72, %v3058, 0
    %v3099 = vsel %vm72, %v3059, 0
    %v3102 = vsel %vm72, %v3060, 0
    %v3105 = vsel %vm72, %v3061, 0
    %v3108 = vsel %vm72, %v3062, 0
    %v3111 = vsel %vm72, %v3063, 0
    %v3114 = vsel %vm72, %v3064, 0
    %v3117 = vsel %vm72, %v3065, 0
    %v3120 = vsel %vm72, %v3066, 0
    %v3123 = vsel %vm72, %v3067, 0
    %v3126 = vsel %vm72, %v3068, 0
    %v3129 = vsel %vm72, %v3069, 0
    %3131 = vmatprep.subr.mxu0 0.0
    %3132 = vmatpush1.xpose.msra.mxu0 %v3129
    %3133 = vmatprep.subr.mxu0 0.0
    %3134 = vmatpush1.xpose.msra.mxu0 %v3126
    %3135 = vmatprep.subr.mxu0 0.0
    %3136 = vmatpush1.xpose.msra.mxu0 %v3123
    %3137 = vmatprep.subr.mxu0 0.0
    %3138 = vmatpush1.xpose.msra.mxu0 %v3120
    %3139 = vmatprep.subr.mxu0 0.0
    %3140 = vmatpush1.xpose.msra.mxu0 %v3117
    %3141 = vmatprep.subr.mxu0 0.0
    %3142 = vmatpush1.xpose.msra.mxu0 %v3114
    %3143 = vmatprep.subr.mxu0 0.0
    %3144 = vmatpush1.xpose.msra.mxu0 %v3111
    %3145 = vmatprep.subr.mxu0 0.0
    %3146 = vmatpush1.xpose.msra.mxu0 %v3108
    %3147 = vmatprep.subr.mxu0 0.0
    %3148 = vmatpush1.xpose.msra.mxu0 %v3105
    %3149 = vmatprep.subr.mxu0 0.0
    %3150 = vmatpush1.xpose.msra.mxu0 %v3102
    %3151 = vmatprep.subr.mxu0 0.0
    %3152 = vmatpush1.xpose.msra.mxu0 %v3099
    %3153 = vmatprep.subr.mxu0 0.0
    %3154 = vmatpush1.xpose.msra.mxu0 %v3096
    %3155 = vmatprep.subr.mxu0 0.0
    %3156 = vmatpush1.xpose.msra.mxu0 %v3093
    %3157 = vmatprep.subr.mxu0 0.0
    %3158 = vmatpush1.xpose.msra.mxu0 %v3090
    %3159 = vmatprep.subr.mxu0 0.0
    %3160 = vmatpush1.xpose.msra.mxu0 %v3087
    %3161 = vmatprep.subr.mxu0 0.0
    %3162 = vmatpush1.xpose.msra.mxu0 %v3084
    %3163 = vmatprep.subr.mxu0 0.0
    %3164 = vmatpush2.xpose.msra.mxu0 0.0
    %3165 = vmatprep.subr.mxu0 0.0
    %3166 = vmatpush2.xpose.msra.mxu0 0.0
    %3167 = vmatprep.subr.mxu0 0.0
    %3168 = vmatpush2.xpose.msra.mxu0 0.0
    %3169 = vmatprep.subr.mxu0 0.0
    %3170 = vmatpush2.xpose.msra.mxu0 0.0
    %3171 = vmatprep.subr.mxu0 0.0
    %3172 = vmatpush2.xpose.msra.mxu0 0.0
    %3173 = vmatprep.subr.mxu0 0.0
    %3174 = vmatpush2.xpose.msra.mxu0 0.0
    %3175 = vmatprep.subr.mxu0 0.0
    %3176 = vmatpush2.xpose.msra.mxu0 0.0
    %3177 = vmatprep.subr.mxu0 0.0
    %3178 = vmatpush2.xpose.msra.mxu0 0.0
    %3179 = vmatprep.subr.mxu0 0.0
    %3180 = vmatpush2.xpose.msra.mxu0 0.0
    %3181 = vmatprep.subr.mxu0 0.0
    %3182 = vmatpush2.xpose.msra.mxu0 0.0
    %3183 = vmatprep.subr.mxu0 0.0
    %3184 = vmatpush2.xpose.msra.mxu0 0.0
    %3185 = vmatprep.subr.mxu0 0.0
    %3186 = vmatpush2.xpose.msra.mxu0 0.0
    %3187 = vmatprep.subr.mxu0 0.0
    %3188 = vmatpush2.xpose.msra.mxu0 0.0
    %3189 = vmatprep.subr.mxu0 0.0
    %3190 = vmatpush2.xpose.msra.mxu0 0.0
    %3191 = vmatprep.subr.mxu0 0.0
    %3192 = vmatpush2.xpose.msra.mxu0 0.0
    %3193 = vmatprep.subr.mxu0 0.0
    %3194 = vmatpush2.xpose.msra.mxu0 0.0
    %3195 = vmatprep.mubr.f32.mxu0 0.0
    %3196 = vmatmul.mubr.f32.gmra.mxu0 %v3078
    %v3197 = vpop.f32.mrf.mxu0
    %v3198 = vadd.f32 %v3075, %v3197
    %v3199 = vpop.f32.mrf.mxu0
    %3200 = vmatprep.mubr.f32.mxu0 0.0
    %3201 = vmatmul.mubr.f32.gmra.mxu0 %v3081
    %v3202 = vpop.f32.mrf.mxu0
    %v3203 = vadd.f32 %v3075, %v3202
    %v3204 = vpop.f32.mrf.mxu0
    %3205 = vdwg.mxu0
    %3206 = vst [vmem:[#allocation2] sm:$0xff] %v3198
    %3207 = vst [vmem:[#allocation2 + $0x8] sm:$0xff] %v3203
    // Predicated region
    $region30: #{tpu_custom_call.1} parent=1 // pred_check
      _
    $region31: #{tpu_custom_call.1} parent=1 // pred_check_branch
      %3209 = sbr.rel (0) target = $region33
    $region32: #{tpu_custom_call.1} parent=1 // pred_region
      %s3211 = ssub.s32 256, 256
      %3212 = vsyncadd [#allocation3], %s3211
      %s3213 = sshll.u32 [#allocation2], 4
      %s3214 = int_to_ptr.vmem [resolvable:$true] %s3213
      %3219 = dma.vmem_to_hbm [thread:$0]  %s3214, 256, %s7, [#allocation3], 128, 128, 8
    $region33: #{tpu_custom_call.1} parent=1 // pred_fallthru
      _
    // Predicated region
    $region34: #{tpu_custom_call.1} parent=1 // pred_check
      _
    $region35: #{tpu_custom_call.1} parent=1 // pred_check_branch
      %3221 = sbr.rel (0) target = $region37
    $region36: #{tpu_custom_call.1} parent=1 // pred_region
      %3222 = dma.done [#allocation3], 256
    $region37: #{tpu_custom_call.1} parent=1 // pred_fallthru
      _
    %3223 = vsyncpa [#allocation3], 1

</llo_original>
